<compile_context>
chip_gen: v6e
topology: v6e:2x2x1
jax: 0.10.0
libtpu: 0.0.40
codegen_flags: <defaults>
</compile_context>

<pallas_src>
import jax
import jax.numpy as jnp
from jax.experimental import pallas as pl
from jax.experimental.pallas import tpu as pltpu

HIDDEN = 32        # hidden_channels
EMB = 100          # Contrastive_model out_channels (fixed to 100 in the module)
EMB_PAD = 128      # lane-aligned embedding width (zero padded in the weights only)
VID_IN = 400       # raw video feature width (fed unpadded)
TXT_IN = 768       # text feature width (6 x 128)
EPS = 1e-12        # F.normalize eps


def downstream_kernel(xv_ref, xt_ref, w1v_ref, w1t_ref, w2_ref, w3_ref,
                      wc_ref, sp_ref, out_ref):
    f32 = jnp.float32

    # Packed small-parameter slab: biases + final-layer row.
    sp = sp_ref[...]                              # (8, 256)
    b1   = sp[0:1, 0:2 * HIDDEN]                  # [bv1 | bt1]       (1, 64)
    b2   = sp[1:2, 0:2 * HIDDEN]                  # [bv2 | bt2]       (1, 64)
    b3   = sp[2:3, :]                             # [bv3_pad|bt3_pad] (1, 256)
    bc1  = sp[3:4, 0:HIDDEN]                      # classifier bias   (1, 32)
    wc2r = sp[4:5, 0:HIDDEN]                      # final weight row  (1, 32)
    bc2  = sp[5:6, 0:1]                           # final bias        (1, 1)

    # Activations may arrive bf16 from the producer (DMA savings); upcast in VMEM.
    xv = xv_ref[...].astype(f32)
    xt = xt_ref[...].astype(f32)

    # Layer 1 (fused): video weights occupy cols 0..31, text weights cols 32..63.
    h = (jnp.dot(xv, w1v_ref[...], preferred_element_type=f32)
         + jnp.dot(xt, w1t_ref[...], preferred_element_type=f32)
         + b1)
    h = jnp.maximum(h, 0.0)

    # Layer 2 (fused, block-diagonal (64, 64)).
    h = jnp.maximum(jnp.dot(h, w2_ref[...], preferred_element_type=f32) + b2, 0.0)

    # Layer 3 (fused, block-diagonal (64, 256)) -> [ev_pad(128) | et_pad(128)].
    e = jnp.dot(h, w3_ref[...], preferred_element_type=f32) + b3      # (TB, 256)

    # F.normalize(x, p=2, dim=1): x / max(||x||_2, eps), per 128-lane half.
    # Padded weight columns are exactly zero, so the norms equal the unpadded ones.
    ev = e[:, :EMB_PAD]
    et = e[:, EMB_PAD:]
    ev_n = ev / jnp.maximum(jnp.sqrt(jnp.sum(ev * ev, axis=-1, keepdims=True)), EPS)
    et_n = et / jnp.maximum(jnp.sqrt(jnp.sum(et * et, axis=-1, keepdims=True)), EPS)

    # Classifier layer 1: cat([et, ev]) @ Wc1 folded into two half-width matmuls
    # against the pre-reordered / pre-padded (256, 32) weight (rows 0..127 -> video
    # half, rows 128..255 -> text half).  Avoids a lane-concat of the normalized halves.
    wc = wc_ref[...]
    h2 = jnp.maximum(
        jnp.dot(ev_n, wc[:EMB_PAD, :], preferred_element_type=f32)
        + jnp.dot(et_n, wc[EMB_PAD:, :], preferred_element_type=f32)
        + bc1, 0.0)                                                    # (TB, 32)

    # Final (32 -> 1) layer as a lane-dense (1, TB) row: contract last dims of
    # (1, 32) and (TB, 32) on the MXU (full-lane output; no 1-lane masked stores).
    out_row = jax.lax.dot_general(
        wc2r, h2, dimension_numbers=(((1,), (1,)), ((), ())),
        preferred_element_type=f32) + bc2                              # (1, TB)
    out_ref[0] = out_row


def _round_up(x, m):
    return (x + m - 1) // m * m


def pack_params(raw):
    """Build the fused/padded kernel parameters from the natural (in,out)-layout params."""
    (wv1, bv1, wv2, bv2, wv3, bv3,
     wt1, bt1, wt2, bt2, wt3, bt3,
     wc1, bc1, wc2, bc2) = [jnp.asarray(a, jnp.float32) for a in raw]
    H = HIDDEN

    w1v = jnp.zeros((VID_IN, 2 * H), jnp.float32).at[:, :H].set(wv1)
    w1t = jnp.zeros((TXT_IN, 2 * H), jnp.float32).at[:, H:].set(wt1)
    w2 = (jnp.zeros((2 * H, 2 * H), jnp.float32)
          .at[:H, :H].set(wv2).at[H:, H:].set(wt2))
    w3 = (jnp.zeros((2 * H, 2 * EMB_PAD), jnp.float32)
          .at[:H, :EMB].set(wv3).at[H:, EMB_PAD:EMB_PAD + EMB].set(wt3))

    # Kernel embedding layout is [ev_pad | et_pad]; torch concatenates [text, video],
    # so Wc1 rows 0..99 (text) go to kernel rows 128.., rows 100..199 (video) to 0..
    wc = (jnp.zeros((2 * EMB_PAD, H), jnp.float32)
          .at[:EMB, :].set(wc1[EMB:, :])
          .at[EMB_PAD:EMB_PAD + EMB, :].set(wc1[:EMB, :]))

    sp = jnp.zeros((8, 2 * EMB_PAD), jnp.float32)
    sp = sp.at[0, :H].set(bv1[0]).at[0, H:2 * H].set(bt1[0])
    sp = sp.at[1, :H].set(bv2[0]).at[1, H:2 * H].set(bt2[0])
    sp = sp.at[2, :EMB].set(bv3[0]).at[2, EMB_PAD:EMB_PAD + EMB].set(bt3[0])
    sp = sp.at[3, :H].set(bc1[0])
    sp = sp.at[4, :H].set(wc2[:, 0])
    sp = sp.at[5, 0].set(bc2[0, 0])
    return (w1v, w1t, w2, w3, wc, sp)


def _choose_tb(B, tb_max=2048):
    # >= 2 grid steps whenever B allows (v7x has 2 TCs; "parallel" shards the grid),
    # rows in multiples of 8, capped so double-buffered f32 tiles stay ~20 MB (safe
    # for v7x's 64 MiB physical / 32 MiB scoped VMEM).
    tb = _round_up(max(1, -(-B // 2)), 8)
    return max(8, min(tb_max, tb))


def downstream_forward(x_video, x_text, kparams, tb=None):
    """x_video: (B, 400), x_text: (B, 768) (f32 or bf16) -> (B, 1) f32."""
    w1v, w1t, w2, w3, wc, sp = kparams
    B = x_video.shape[0]

    if tb is None:
        tb = _choose_tb(B)
    tb = max(8, _round_up(min(tb, _round_up(B, 8)), 8))
    n_tiles = pl.cdiv(B, tb)

    xv = jnp.asarray(x_video)   # fed unpadded: no extra HBM pass
    xt = jnp.asarray(x_text)

    # Scoped-VMEM budget: double-buffered activation tiles + output + resident weights.
    act_bytes = tb * (VID_IN * xv.dtype.itemsize + TXT_IN * xt.dtype.itemsize)
    w_bytes = sum(int(w.size) * w.dtype.itemsize for w in kparams)
    vmem_limit = 2 * (act_bytes + tb * 4 + w_bytes) + (8 << 20)   # + headroom
    vmem_limit = int(min(max(vmem_limit, 32 << 20), 56 << 20))    # stay under v7x 64 MiB

    def const_spec(arr):
        # Constant index_map: weights stay VMEM-resident across grid steps.
        # TODO(synk): pipeline_mode=pl.Buffered(1) would drop the duplicate weight
        # buffer (~0.4 MB) if tb were ever pushed to the v7x VMEM ceiling.
        return pl.BlockSpec(arr.shape, lambda i: (0, 0))

    out = pl.pallas_call(
        downstream_kernel,
        out_shape=jax.ShapeDtypeStruct((n_tiles, 1, tb), jnp.float32),
        grid=(n_tiles,),
        in_specs=[
            pl.BlockSpec((tb, VID_IN), lambda i: (i, 0)),
            pl.BlockSpec((tb, TXT_IN), lambda i: (i, 0)),
            const_spec(w1v), const_spec(w1t), const_spec(w2),
            const_spec(w3), const_spec(wc), const_spec(sp),
        ],
        out_specs=pl.BlockSpec((1, 1, tb), lambda i: (i, 0, 0)),
        compiler_params=pltpu.CompilerParams(
            dimension_semantics=("parallel",),
            vmem_limit_bytes=vmem_limit),
    )(xv, xt, w1v, w1t, w2, w3, wc, sp)

    # Rows >= B in the last tile are row-independent garbage; slice them off.
    return out.reshape(-1)[:B].reshape(B, 1)


# ---------------- deterministic synthetic parameters (PyTorch-like uniform init) ----------------
def init_linear(key, fan_in, fan_out):
    kw, kb = jax.random.split(key)
    bound = 1.0 / float(fan_in) ** 0.5
    w = jax.random.uniform(kw, (fan_in, fan_out), jnp.float32, -bound, bound)
    b = jax.random.uniform(kb, (1, fan_out), jnp.float32, -bound, bound)
    return w, b


def reference_forward(xv, xt, raw):
    (wv1, bv1, wv2, bv2, wv3, bv3,
     wt1, bt1, wt2, bt2, wt3, bt3,
     wc1, bc1, wc2, bc2) = raw
    hv = jnp.maximum(xv @ wv1 + bv1, 0.0)
    hv = jnp.maximum(hv @ wv2 + bv2, 0.0)
    ev = hv @ wv3 + bv3
    ht = jnp.maximum(xt @ wt1 + bt1, 0.0)
    ht = jnp.maximum(ht @ wt2 + bt2, 0.0)
    et = ht @ wt3 + bt3
    ev = ev / jnp.maximum(jnp.linalg.norm(ev, axis=1, keepdims=True), EPS)
    et = et / jnp.maximum(jnp.linalg.norm(et, axis=1, keepdims=True), EPS)
    x = jnp.concatenate([et, ev], axis=1)
    h = jnp.maximum(x @ wc1 + bc1, 0.0)
    return h @ wc2 + bc2


if __name__ == "__main__":
    key = jax.random.PRNGKey(0)
    keys = jax.random.split(key, 10)
    B = 48   # -> tb = 24, grid = 2 steps (exercises tiling + remainder-free path)

    x_video = jax.random.normal(keys[0], (B, VID_IN), jnp.float32)
    x_text = jax.random.normal(keys[1], (B, TXT_IN), jnp.float32)

    wv1, bv1 = init_linear(keys[2], VID_IN, HIDDEN)
    wv2, bv2 = init_linear(keys[3], HIDDEN, HIDDEN)
    wv3, bv3 = init_linear(keys[4], HIDDEN, EMB)
    wt1, bt1 = init_linear(keys[5], TXT_IN, HIDDEN)
    wt2, bt2 = init_linear(keys[6], HIDDEN, HIDDEN)
    wt3, bt3 = init_linear(keys[7], HIDDEN, EMB)
    wc1, bc1 = init_linear(keys[8], 2 * EMB, HIDDEN)
    wc2, bc2 = init_linear(keys[9], HIDDEN, 1)

    raw = (wv1, bv1, wv2, bv2, wv3, bv3,
           wt1, bt1, wt2, bt2, wt3, bt3,
           wc1, bc1, wc2, bc2)
    kparams = pack_params(raw)

    out = downstream_forward(x_video, x_text, kparams)
    out = jax.block_until_ready(out)

    with jax.default_matmul_precision("highest"):
        ref = reference_forward(x_video, x_text, raw)
    ref = jax.block_until_ready(ref)

    assert out.shape == (B, 1)
    assert jnp.allclose(out, ref, rtol=1e-4, atol=1e-5), "mismatch vs pure-JAX reference"
    print("KERNEL_OK")
</pallas_src>

<mosaic_0001>
module attributes {stable_mosaic.version = 11 : i64} {
  func.func @downstream_kernel(%arg0: i32, %arg1: memref<24x400xf32, #tpu.memory_space<vmem>>, %arg2: memref<24x768xf32, #tpu.memory_space<vmem>>, %arg3: memref<400x64xf32, #tpu.memory_space<vmem>>, %arg4: memref<768x64xf32, #tpu.memory_space<vmem>>, %arg5: memref<64x64xf32, #tpu.memory_space<vmem>>, %arg6: memref<64x256xf32, #tpu.memory_space<vmem>>, %arg7: memref<256x32xf32, #tpu.memory_space<vmem>>, %arg8: memref<8x256xf32, #tpu.memory_space<vmem>>, %arg9: memref<1x1x24xf32, #tpu.memory_space<vmem>>) attributes {dimension_semantics = [#tpu.dimension_semantics<parallel>], iteration_bounds = array<i64: 2>, scalar_prefetch = 0 : i64, scratch_operands = 0 : i64, tpu.core_type = #tpu.core_type<tc>, window_params = [{transform_indices = @transform_0, window_bounds = array<i64: 24, 400>}, {transform_indices = @transform_1, window_bounds = array<i64: 24, 768>}, {pipeline_mode = #tpu.pipeline_mode<synchronous>, transform_indices = @transform_2, window_bounds = array<i64: 400, 64>}, {pipeline_mode = #tpu.pipeline_mode<synchronous>, transform_indices = @transform_3, window_bounds = array<i64: 768, 64>}, {pipeline_mode = #tpu.pipeline_mode<synchronous>, transform_indices = @transform_4, window_bounds = array<i64: 64, 64>}, {pipeline_mode = #tpu.pipeline_mode<synchronous>, transform_indices = @transform_5, window_bounds = array<i64: 64, 256>}, {pipeline_mode = #tpu.pipeline_mode<synchronous>, transform_indices = @transform_6, window_bounds = array<i64: 256, 32>}, {pipeline_mode = #tpu.pipeline_mode<synchronous>, transform_indices = @transform_7, window_bounds = array<i64: 8, 256>}, {transform_indices = @transform_8, window_bounds = array<i64: 1, 1, 24>}]} {
    %c0 = arith.constant 0 : index
    %c0_0 = arith.constant 0 : index
    %0 = vector.load %arg8[%c0, %c0_0] : memref<8x256xf32, #tpu.memory_space<vmem>>, vector<8x256xf32>
    %1 = vector.extract_strided_slice %0 {offsets = [0, 0], sizes = [1, 64], strides = [1, 1]} : vector<8x256xf32> to vector<1x64xf32>
    %2 = vector.extract_strided_slice %0 {offsets = [1, 0], sizes = [1, 64], strides = [1, 1]} : vector<8x256xf32> to vector<1x64xf32>
    %3 = vector.extract_strided_slice %0 {offsets = [2, 0], sizes = [1, 256], strides = [1, 1]} : vector<8x256xf32> to vector<1x256xf32>
    %4 = vector.extract_strided_slice %0 {offsets = [3, 0], sizes = [1, 32], strides = [1, 1]} : vector<8x256xf32> to vector<1x32xf32>
    %5 = vector.extract_strided_slice %0 {offsets = [4, 0], sizes = [1, 32], strides = [1, 1]} : vector<8x256xf32> to vector<1x32xf32>
    %6 = vector.extract_strided_slice %0 {offsets = [5, 0], sizes = [1, 1], strides = [1, 1]} : vector<8x256xf32> to vector<1x1xf32>
    %c0_1 = arith.constant 0 : index
    %c0_2 = arith.constant 0 : index
    %7 = vector.load %arg1[%c0_1, %c0_2] : memref<24x400xf32, #tpu.memory_space<vmem>>, vector<24x400xf32>
    %c0_3 = arith.constant 0 : index
    %c0_4 = arith.constant 0 : index
    %8 = vector.load %arg2[%c0_3, %c0_4] : memref<24x768xf32, #tpu.memory_space<vmem>>, vector<24x768xf32>
    %c0_5 = arith.constant 0 : index
    %c0_6 = arith.constant 0 : index
    %9 = vector.load %arg3[%c0_5, %c0_6] : memref<400x64xf32, #tpu.memory_space<vmem>>, vector<400x64xf32>
    %cst = arith.constant dense<0.000000e+00> : vector<24x64xf32>
    %10 = tpu.matmul %7, %9, %cst {dimension_numbers = #tpu.dot_dimension_numbers<[1], [0], [0], [1], [0, 0, 1, 1], [], []>} : vector<24x400xf32>, vector<400x64xf32>, vector<24x64xf32> -> vector<24x64xf32>
    %c0_7 = arith.constant 0 : index
    %c0_8 = arith.constant 0 : index
    %11 = vector.load %arg4[%c0_7, %c0_8] : memref<768x64xf32, #tpu.memory_space<vmem>>, vector<768x64xf32>
    %cst_9 = arith.constant dense<0.000000e+00> : vector<24x64xf32>
    %12 = tpu.matmul %8, %11, %cst_9 {dimension_numbers = #tpu.dot_dimension_numbers<[1], [0], [0], [1], [0, 0, 1, 1], [], []>} : vector<24x768xf32>, vector<768x64xf32>, vector<24x64xf32> -> vector<24x64xf32>
    %13 = arith.addf %10, %12 : vector<24x64xf32>
    %14 = vector.broadcast %1 : vector<1x64xf32> to vector<24x64xf32>
    %15 = arith.addf %13, %14 : vector<24x64xf32>
    %cst_10 = arith.constant 0.000000e+00 : f32
    %16 = vector.broadcast %cst_10 : f32 to vector<24x64xf32>
    %17 = arith.maximumf %15, %16 : vector<24x64xf32>
    %c0_11 = arith.constant 0 : index
    %c0_12 = arith.constant 0 : index
    %18 = vector.load %arg5[%c0_11, %c0_12] : memref<64x64xf32, #tpu.memory_space<vmem>>, vector<64x64xf32>
    %cst_13 = arith.constant dense<0.000000e+00> : vector<24x64xf32>
    %19 = tpu.matmul %17, %18, %cst_13 {dimension_numbers = #tpu.dot_dimension_numbers<[1], [0], [0], [1], [0, 0, 1, 1], [], []>} : vector<24x64xf32>, vector<64x64xf32>, vector<24x64xf32> -> vector<24x64xf32>
    %20 = vector.broadcast %2 : vector<1x64xf32> to vector<24x64xf32>
    %21 = arith.addf %19, %20 : vector<24x64xf32>
    %cst_14 = arith.constant 0.000000e+00 : f32
    %22 = vector.broadcast %cst_14 : f32 to vector<24x64xf32>
    %23 = arith.maximumf %21, %22 : vector<24x64xf32>
    %c0_15 = arith.constant 0 : index
    %c0_16 = arith.constant 0 : index
    %24 = vector.load %arg6[%c0_15, %c0_16] : memref<64x256xf32, #tpu.memory_space<vmem>>, vector<64x256xf32>
    %cst_17 = arith.constant dense<0.000000e+00> : vector<24x256xf32>
    %25 = tpu.matmul %23, %24, %cst_17 {dimension_numbers = #tpu.dot_dimension_numbers<[1], [0], [0], [1], [0, 0, 1, 1], [], []>} : vector<24x64xf32>, vector<64x256xf32>, vector<24x256xf32> -> vector<24x256xf32>
    %26 = vector.broadcast %3 : vector<1x256xf32> to vector<24x256xf32>
    %27 = arith.addf %25, %26 : vector<24x256xf32>
    %28 = vector.extract_strided_slice %27 {offsets = [0, 0], sizes = [24, 128], strides = [1, 1]} : vector<24x256xf32> to vector<24x128xf32>
    %29 = vector.extract_strided_slice %27 {offsets = [0, 128], sizes = [24, 128], strides = [1, 1]} : vector<24x256xf32> to vector<24x128xf32>
    %30 = arith.mulf %28, %28 : vector<24x128xf32>
    %cst_18 = arith.constant dense<0.000000e+00> : vector<24xf32>
    %31 = vector.multi_reduction <add>, %30, %cst_18 [1] : vector<24x128xf32> to vector<24xf32>
    %32 = vector.shape_cast %31 : vector<24xf32> to vector<24x1xf32>
    %33 = math.sqrt %32 : vector<24x1xf32>
    %cst_19 = arith.constant 9.99999996E-13 : f32
    %34 = vector.broadcast %cst_19 : f32 to vector<24x1xf32>
    %35 = arith.maximumf %33, %34 : vector<24x1xf32>
    %36 = vector.broadcast %35 : vector<24x1xf32> to vector<24x128xf32>
    %37 = arith.divf %28, %36 : vector<24x128xf32>
    %38 = arith.mulf %29, %29 : vector<24x128xf32>
    %cst_20 = arith.constant dense<0.000000e+00> : vector<24xf32>
    %39 = vector.multi_reduction <add>, %38, %cst_20 [1] : vector<24x128xf32> to vector<24xf32>
    %40 = vector.shape_cast %39 : vector<24xf32> to vector<24x1xf32>
    %41 = math.sqrt %40 : vector<24x1xf32>
    %cst_21 = arith.constant 9.99999996E-13 : f32
    %42 = vector.broadcast %cst_21 : f32 to vector<24x1xf32>
    %43 = arith.maximumf %41, %42 : vector<24x1xf32>
    %44 = vector.broadcast %43 : vector<24x1xf32> to vector<24x128xf32>
    %45 = arith.divf %29, %44 : vector<24x128xf32>
    %c0_22 = arith.constant 0 : index
    %c0_23 = arith.constant 0 : index
    %46 = vector.load %arg7[%c0_22, %c0_23] : memref<256x32xf32, #tpu.memory_space<vmem>>, vector<256x32xf32>
    %47 = vector.extract_strided_slice %46 {offsets = [0, 0], sizes = [128, 32], strides = [1, 1]} : vector<256x32xf32> to vector<128x32xf32>
    %cst_24 = arith.constant dense<0.000000e+00> : vector<24x32xf32>
    %48 = tpu.matmul %37, %47, %cst_24 {dimension_numbers = #tpu.dot_dimension_numbers<[1], [0], [0], [1], [0, 0, 1, 1], [], []>} : vector<24x128xf32>, vector<128x32xf32>, vector<24x32xf32> -> vector<24x32xf32>
    %49 = vector.extract_strided_slice %46 {offsets = [128, 0], sizes = [128, 32], strides = [1, 1]} : vector<256x32xf32> to vector<128x32xf32>
    %cst_25 = arith.constant dense<0.000000e+00> : vector<24x32xf32>
    %50 = tpu.matmul %45, %49, %cst_25 {dimension_numbers = #tpu.dot_dimension_numbers<[1], [0], [0], [1], [0, 0, 1, 1], [], []>} : vector<24x128xf32>, vector<128x32xf32>, vector<24x32xf32> -> vector<24x32xf32>
    %51 = arith.addf %48, %50 : vector<24x32xf32>
    %52 = vector.broadcast %4 : vector<1x32xf32> to vector<24x32xf32>
    %53 = arith.addf %51, %52 : vector<24x32xf32>
    %cst_26 = arith.constant 0.000000e+00 : f32
    %54 = vector.broadcast %cst_26 : f32 to vector<24x32xf32>
    %55 = arith.maximumf %53, %54 : vector<24x32xf32>
    %cst_27 = arith.constant dense<0.000000e+00> : vector<1x24xf32>
    %56 = tpu.matmul %5, %55, %cst_27 {dimension_numbers = #tpu.dot_dimension_numbers<[1], [1], [0], [0], [0, 0, 1, 0], [], []>} : vector<1x32xf32>, vector<24x32xf32>, vector<1x24xf32> -> vector<1x24xf32>
    %57 = vector.broadcast %6 : vector<1x1xf32> to vector<1x24xf32>
    %58 = arith.addf %56, %57 : vector<1x24xf32>
    %c0_28 = arith.constant 0 : index
    %c0_29 = arith.constant 0 : index
    %c0_30 = arith.constant 0 : index
    %59 = vector.load %arg9[%c0_28, %c0_29, %c0_30] : memref<1x1x24xf32, #tpu.memory_space<vmem>>, vector<1x1x24xf32>
    %60 = vector.shape_cast %59 : vector<1x1x24xf32> to vector<1x24xf32>
    %61 = vector.shape_cast %58 : vector<1x24xf32> to vector<1x1x24xf32>
    tpu.vector_store %arg9[%c0_28, %c0_29, %c0_30], %61 {strides = array<i32>} : memref<1x1x24xf32, #tpu.memory_space<vmem>>, vector<1x1x24xf32>,
    return
  }
  func.func @transform_0(%arg0: i32) -> (i32, i32) {
    %c0_i32 = arith.constant 0 : i32
    %c0_i32_0 = arith.constant 0 : i32
    return %arg0, %c0_i32 : i32, i32
  }
  func.func @transform_1(%arg0: i32) -> (i32, i32) {
    %c0_i32 = arith.constant 0 : i32
    %c0_i32_0 = arith.constant 0 : i32
    return %arg0, %c0_i32 : i32, i32
  }
  func.func @transform_2(%arg0: i32) -> (i32, i32) {
    %c0_i32 = arith.constant 0 : i32
    %c0_i32_0 = arith.constant 0 : i32
    %c0_i32_1 = arith.constant 0 : i32
    return %c0_i32, %c0_i32_0 : i32, i32
  }
  func.func @transform_3(%arg0: i32) -> (i32, i32) {
    %c0_i32 = arith.constant 0 : i32
    %c0_i32_0 = arith.constant 0 : i32
    %c0_i32_1 = arith.constant 0 : i32
    return %c0_i32, %c0_i32_0 : i32, i32
  }
  func.func @transform_4(%arg0: i32) -> (i32, i32) {
    %c0_i32 = arith.constant 0 : i32
    %c0_i32_0 = arith.constant 0 : i32
    %c0_i32_1 = arith.constant 0 : i32
    return %c0_i32, %c0_i32_0 : i32, i32
  }
  func.func @transform_5(%arg0: i32) -> (i32, i32) {
    %c0_i32 = arith.constant 0 : i32
    %c0_i32_0 = arith.constant 0 : i32
    %c0_i32_1 = arith.constant 0 : i32
    return %c0_i32, %c0_i32_0 : i32, i32
  }
  func.func @transform_6(%arg0: i32) -> (i32, i32) {
    %c0_i32 = arith.constant 0 : i32
    %c0_i32_0 = arith.constant 0 : i32
    %c0_i32_1 = arith.constant 0 : i32
    return %c0_i32, %c0_i32_0 : i32, i32
  }
  func.func @transform_7(%arg0: i32) -> (i32, i32) {
    %c0_i32 = arith.constant 0 : i32
    %c0_i32_0 = arith.constant 0 : i32
    %c0_i32_1 = arith.constant 0 : i32
    return %c0_i32, %c0_i32_0 : i32, i32
  }
  func.func @transform_8(%arg0: i32) -> (i32, i32, i32) {
    %c0_i32 = arith.constant 0 : i32
    %c0_i32_0 = arith.constant 0 : i32
    %c0_i32_1 = arith.constant 0 : i32
    return %arg0, %c0_i32, %c0_i32_0 : i32, i32, i32
  }
}

</mosaic_0001>

<llo_original>
// kernel: tpu_custom_call.1
$region0: #{tpu_custom_call.1}
  #allocation0 [shape = 'u32[]', space=smem, size = 0x4, offset = 0x4, fixed_abs, tag = 'smem constant byte address 0x4 - core index']
  #allocation1 [shape = 'u32[144,128]{1,0:T(1,128)}', space=vmem, size = 0x12000, scoped, tag = 'internal scratch']
  %s0 = inlined_call_operand.vmem [shape: f32[48,400], index: 0, kind: input, shape index: {}]
  %s1 = inlined_call_operand.vmem [shape: f32[48,768], index: 1, kind: input, shape index: {}]
  %s2 = inlined_call_operand.vmem [shape: f32[400,64], index: 2, kind: input, shape index: {}]
  %s3 = inlined_call_operand.vmem [shape: f32[768,64], index: 3, kind: input, shape index: {}]
  %s4 = inlined_call_operand.vmem [shape: f32[64,64], index: 4, kind: input, shape index: {}]
  %s5 = inlined_call_operand.vmem [shape: f32[64,256], index: 5, kind: input, shape index: {}]
  %s6 = inlined_call_operand.vmem [shape: f32[256,32], index: 6, kind: input, shape index: {}]
  %s7 = inlined_call_operand.vmem [shape: f32[8,256], index: 7, kind: input, shape index: {}]
  %s8 = inlined_call_operand.hbm [shape: f32[2,1,24], index: 8, kind: output, shape index: {}]
  %s9 = sld [smem:[#allocation0]]
  $region65: #{tpu_custom_call.1} parent=0
    _
  %s11 = ssub.s32 1, %s9
  %s12 = scalar_select 0, %s11, %s9
  $region1: #{tpu_custom_call.1} parent=0
    #allocation2 [shape = 'u8[1024]{0}', space=vmem, size = 0x400, scoped, tag = 'output window, operand 0']
    #allocation3 [shape = 's32[2]{0}', space=sflag, size = 0x8, scoped, tag = 'scoped memory for tpu_custom_call.1']
    %13 = vsyncpa [#allocation3], 0
    %s14 = scalar_lea.sflag [#allocation3], 1
    %15 = vsyncpa %s14, 0
    loop: start=0, step=1, limit=4
    $region2: #{tpu_custom_call.1} parent=1 // loop_pre_header
      _
    $region3: #{tpu_custom_call.1} parent=1 // loop_header
      %s17 = sphi 0, %s21
      %p18 = scmp.ge.s32.totalorder %s17, 4
      %s27 = sphi 0, %s29
      %s30 = sphi 0, %s27
      %s31 = sphi 0, %s30
      %s47 = sphi 0, %s31
      %s53 = sphi 0, %s55
      %s56 = sphi 0, %s53
      %s57 = sphi 0, %s56
      %s73 = sphi 0, %s57
      %s77 = sphi 0, %s77
      %s79 = sphi 0, %s77
      %s80 = sphi 0, %s79
      %s94 = sphi 0, %s80
      %s98 = sphi 0, %s98
      %s100 = sphi 0, %s98
      %s101 = sphi 0, %s100
      %s115 = sphi 0, %s101
      %s119 = sphi 0, %s119
      %s121 = sphi 0, %s119
      %s122 = sphi 0, %s121
      %s136 = sphi 0, %s122
      %s140 = sphi 0, %s140
      %s142 = sphi 0, %s140
      %s143 = sphi 0, %s142
      %s157 = sphi 0, %s143
      %s161 = sphi 0, %s161
      %s163 = sphi 0, %s161
      %s164 = sphi 0, %s163
      %s178 = sphi 0, %s164
      %s182 = sphi 0, %s182
      %s184 = sphi 0, %s182
      %s185 = sphi 0, %s184
      %s199 = sphi 0, %s185
      %s205 = sphi 0, %s207
      %s208 = sphi 0, %s205
      %s209 = sphi 0, %s208
      %s225 = sphi 0, %s209
    $region4: #{tpu_custom_call.1} parent=1 // loop_header_branch
      %20 = sbr.rel (%p18) target = $region8
    $region5: #{tpu_custom_call.1} parent=1 // loop_body
      %s22 = ssub.s32 %s17, 1
      %s23 = ssub.s32 %s17, 2
      %s24 = sadd.s32 %s17, 1
      %s25 = ssub.s32 %s17, %s24
      %p26 = scmp.eq.s32.totalorder %s25, 0
      %s28 = sadd.s32 %s27, 1
      %s29 = scalar_select %p26, %s27, %s28
      %p32 = pneg %p26
      %p33 = scmp.eq.s32.totalorder %s17, 1
      %p34 = por %p32, %p33
      %p35 = scmp.ne.s32.totalorder %s27, %s30
      %p36 = scmp.eq.s32.totalorder %s17, 0
      %p37 = por %p35, %p36
      %p38 = scmp.ne.s32.totalorder %s27, %s30
      %p39 = scmp.eq.s32.totalorder %s22, 1
      %p40 = por %p38, %p39
      %p41 = scmp.ne.s32.totalorder %s30, %s31
      %p42 = scmp.eq.s32.totalorder %s22, 0
      %p43 = por %p41, %p42
      %p44 = scmp.ne.s32.totalorder %s30, %s31
      %p45 = scmp.eq.s32.totalorder %s23, 1
      %p46 = por %p44, %p45
      %p48 = scmp.ne.s32.totalorder %s31, %s47
      %p49 = scmp.eq.s32.totalorder %s23, 0
      %p50 = por %p48, %p49
      %s51 = ssub.s32 %s17, %s24
      %p52 = scmp.eq.s32.totalorder %s51, 0
      %s54 = sadd.s32 %s53, 1
      %s55 = scalar_select %p52, %s53, %s54
      %p58 = pneg %p52
      %p59 = scmp.eq.s32.totalorder %s17, 1
      %p60 = por %p58, %p59
      %p61 = scmp.ne.s32.totalorder %s53, %s56
      %p62 = scmp.eq.s32.totalorder %s17, 0
      %p63 = por %p61, %p62
      %p64 = scmp.ne.s32.totalorder %s53, %s56
      %p65 = scmp.eq.s32.totalorder %s22, 1
      %p66 = por %p64, %p65
      %p67 = scmp.ne.s32.totalorder %s56, %s57
      %p68 = scmp.eq.s32.totalorder %s22, 0
      %p69 = por %p67, %p68
      %p70 = scmp.ne.s32.totalorder %s56, %s57
      %p71 = scmp.eq.s32.totalorder %s23, 1
      %p72 = por %p70, %p71
      %p74 = scmp.ne.s32.totalorder %s57, %s73
      %p75 = scmp.eq.s32.totalorder %s23, 0
      %p76 = por %p74, %p75
      %s78 = sadd.s32 %s77, 1
      %p81 = scmp.eq.s32.totalorder %s17, 1
      %p82 = scmp.ne.s32.totalorder %s77, %s79
      %p83 = scmp.eq.s32.totalorder %s17, 0
      %p84 = por %p82, %p83
      %p85 = scmp.ne.s32.totalorder %s77, %s79
      %p86 = scmp.eq.s32.totalorder %s22, 1
      %p87 = por %p85, %p86
      %p88 = scmp.ne.s32.totalorder %s79, %s80
      %p89 = scmp.eq.s32.totalorder %s22, 0
      %p90 = por %p88, %p89
      %p91 = scmp.ne.s32.totalorder %s79, %s80
      %p92 = scmp.eq.s32.totalorder %s23, 1
      %p93 = por %p91, %p92
      %p95 = scmp.ne.s32.totalorder %s80, %s94
      %p96 = scmp.eq.s32.totalorder %s23, 0
      %p97 = por %p95, %p96
      %s99 = sadd.s32 %s98, 1
      %p102 = scmp.eq.s32.totalorder %s17, 1
      %p103 = scmp.ne.s32.totalorder %s98, %s100
      %p104 = scmp.eq.s32.totalorder %s17, 0
      %p105 = por %p103, %p104
      %p106 = scmp.ne.s32.totalorder %s98, %s100
      %p107 = scmp.eq.s32.totalorder %s22, 1
      %p108 = por %p106, %p107
      %p109 = scmp.ne.s32.totalorder %s100, %s101
      %p110 = scmp.eq.s32.totalorder %s22, 0
      %p111 = por %p109, %p110
      %p112 = scmp.ne.s32.totalorder %s100, %s101
      %p113 = scmp.eq.s32.totalorder %s23, 1
      %p114 = por %p112, %p113
      %p116 = scmp.ne.s32.totalorder %s101, %s115
      %p117 = scmp.eq.s32.totalorder %s23, 0
      %p118 = por %p116, %p117
      %s120 = sadd.s32 %s119, 1
      %p123 = scmp.eq.s32.totalorder %s17, 1
      %p124 = scmp.ne.s32.totalorder %s119, %s121
      %p125 = scmp.eq.s32.totalorder %s17, 0
      %p126 = por %p124, %p125
      %p127 = scmp.ne.s32.totalorder %s119, %s121
      %p128 = scmp.eq.s32.totalorder %s22, 1
      %p129 = por %p127, %p128
      %p130 = scmp.ne.s32.totalorder %s121, %s122
      %p131 = scmp.eq.s32.totalorder %s22, 0
      %p132 = por %p130, %p131
      %p133 = scmp.ne.s32.totalorder %s121, %s122
      %p134 = scmp.eq.s32.totalorder %s23, 1
      %p135 = por %p133, %p134
      %p137 = scmp.ne.s32.totalorder %s122, %s136
      %p138 = scmp.eq.s32.totalorder %s23, 0
      %p139 = por %p137, %p138
      %s141 = sadd.s32 %s140, 1
      %p144 = scmp.eq.s32.totalorder %s17, 1
      %p145 = scmp.ne.s32.totalorder %s140, %s142
      %p146 = scmp.eq.s32.totalorder %s17, 0
      %p147 = por %p145, %p146
      %p148 = scmp.ne.s32.totalorder %s140, %s142
      %p149 = scmp.eq.s32.totalorder %s22, 1
      %p150 = por %p148, %p149
      %p151 = scmp.ne.s32.totalorder %s142, %s143
      %p152 = scmp.eq.s32.totalorder %s22, 0
      %p153 = por %p151, %p152
      %p154 = scmp.ne.s32.totalorder %s142, %s143
      %p155 = scmp.eq.s32.totalorder %s23, 1
      %p156 = por %p154, %p155
      %p158 = scmp.ne.s32.totalorder %s143, %s157
      %p159 = scmp.eq.s32.totalorder %s23, 0
      %p160 = por %p158, %p159
      %s162 = sadd.s32 %s161, 1
      %p165 = scmp.eq.s32.totalorder %s17, 1
      %p166 = scmp.ne.s32.totalorder %s161, %s163
      %p167 = scmp.eq.s32.totalorder %s17, 0
      %p168 = por %p166, %p167
      %p169 = scmp.ne.s32.totalorder %s161, %s163
      %p170 = scmp.eq.s32.totalorder %s22, 1
      %p171 = por %p169, %p170
      %p172 = scmp.ne.s32.totalorder %s163, %s164
      %p173 = scmp.eq.s32.totalorder %s22, 0
      %p174 = por %p172, %p173
      %p175 = scmp.ne.s32.totalorder %s163, %s164
      %p176 = scmp.eq.s32.totalorder %s23, 1
      %p177 = por %p175, %p176
      %p179 = scmp.ne.s32.totalorder %s164, %s178
      %p180 = scmp.eq.s32.totalorder %s23, 0
      %p181 = por %p179, %p180
      %s183 = sadd.s32 %s182, 1
      %p186 = scmp.eq.s32.totalorder %s17, 1
      %p187 = scmp.ne.s32.totalorder %s182, %s184
      %p188 = scmp.eq.s32.totalorder %s17, 0
      %p189 = por %p187, %p188
      %p190 = scmp.ne.s32.totalorder %s182, %s184
      %p191 = scmp.eq.s32.totalorder %s22, 1
      %p192 = por %p190, %p191
      %p193 = scmp.ne.s32.totalorder %s184, %s185
      %p194 = scmp.eq.s32.totalorder %s22, 0
      %p195 = por %p193, %p194
      %p196 = scmp.ne.s32.totalorder %s184, %s185
      %p197 = scmp.eq.s32.totalorder %s23, 1
      %p198 = por %p196, %p197
      %p200 = scmp.ne.s32.totalorder %s185, %s199
      %p201 = scmp.eq.s32.totalorder %s23, 0
      %p202 = por %p200, %p201
      %s203 = ssub.s32 %s17, %s24
      %p204 = scmp.eq.s32.totalorder %s203, 0
      %s206 = sadd.s32 %s205, 1
      %s207 = scalar_select %p204, %s205, %s206
      %p210 = pneg %p204
      %p211 = scmp.eq.s32.totalorder %s17, 1
      %p212 = por %p210, %p211
      %p213 = scmp.ne.s32.totalorder %s205, %s208
      %p214 = scmp.eq.s32.totalorder %s17, 0
      %p215 = por %p213, %p214
      %p216 = scmp.ne.s32.totalorder %s205, %s208
      %p217 = scmp.eq.s32.totalorder %s22, 1
      %p218 = por %p216, %p217
      %p219 = scmp.ne.s32.totalorder %s208, %s209
      %p220 = scmp.eq.s32.totalorder %s22, 0
      %p221 = por %p219, %p220
      %p222 = scmp.ne.s32.totalorder %s208, %s209
      %p223 = scmp.eq.s32.totalorder %s23, 1
      %p224 = por %p222, %p223
      %p226 = scmp.ne.s32.totalorder %s209, %s225
      %p227 = scmp.eq.s32.totalorder %s23, 0
      %p228 = por %p226, %p227
      %p229 = scmp.le.s32.totalorder 1, %s17
      %p230 = scmp.lt.s32.totalorder %s17, 3
      %p231 = pnand %p229, %p230
      %p232 = pneg %p231
      // Predicated region
      $region9: #{tpu_custom_call.1} parent=5 // pred_check
        _
      $region10: #{tpu_custom_call.1} parent=5 // pred_check_branch
        %234 = sbr.rel (%p231) target = $region12
      $region11: #{tpu_custom_call.1} parent=5 // pred_region
        %s235 = ssub.s32 %s17, 1
        // Predicated region
        $region13: #{tpu_custom_call.1} parent=11 // pred_check
          %p236 = pneg %p90
        $region14: #{tpu_custom_call.1} parent=11 // pred_check_branch
          %238 = sbr.rel (%p236) target = $region16
        $region15: #{tpu_custom_call.1} parent=11 // pred_region
          _
        $region16: #{tpu_custom_call.1} parent=11 // pred_fallthru
          _
        // Predicated region
        $region17: #{tpu_custom_call.1} parent=11 // pred_check
          %p239 = pneg %p111
        $region18: #{tpu_custom_call.1} parent=11 // pred_check_branch
          %241 = sbr.rel (%p239) target = $region20
        $region19: #{tpu_custom_call.1} parent=11 // pred_region
          _
        $region20: #{tpu_custom_call.1} parent=11 // pred_fallthru
          _
        // Predicated region
        $region21: #{tpu_custom_call.1} parent=11 // pred_check
          %p242 = pneg %p132
        $region22: #{tpu_custom_call.1} parent=11 // pred_check_branch
          %244 = sbr.rel (%p242) target = $region24
        $region23: #{tpu_custom_call.1} parent=11 // pred_region
          _
        $region24: #{tpu_custom_call.1} parent=11 // pred_fallthru
          _
        // Predicated region
        $region25: #{tpu_custom_call.1} parent=11 // pred_check
          %p245 = pneg %p153
        $region26: #{tpu_custom_call.1} parent=11 // pred_check_branch
          %247 = sbr.rel (%p245) target = $region28
        $region27: #{tpu_custom_call.1} parent=11 // pred_region
          _
        $region28: #{tpu_custom_call.1} parent=11 // pred_fallthru
          _
        // Predicated region
        $region29: #{tpu_custom_call.1} parent=11 // pred_check
          %p248 = pneg %p174
        $region30: #{tpu_custom_call.1} parent=11 // pred_check_branch
          %250 = sbr.rel (%p248) target = $region32
        $region31: #{tpu_custom_call.1} parent=11 // pred_region
          _
        $region32: #{tpu_custom_call.1} parent=11 // pred_fallthru
          _
        // Predicated region
        $region33: #{tpu_custom_call.1} parent=11 // pred_check
          %p251 = pneg %p195
        $region34: #{tpu_custom_call.1} parent=11 // pred_check_branch
          %253 = sbr.rel (%p251) target = $region36
        $region35: #{tpu_custom_call.1} parent=11 // pred_region
          _
        $region36: #{tpu_custom_call.1} parent=11 // pred_fallthru
          _
      $region12: #{tpu_custom_call.1} parent=5 // pred_fallthru
        _
      %p254 = scmp.lt.s32.totalorder %s17, 2
      // Predicated region
      $region37: #{tpu_custom_call.1} parent=5 // pred_check
        %p255 = pneg %p254
      $region38: #{tpu_custom_call.1} parent=5 // pred_check_branch
        %257 = sbr.rel (%p255) target = $region40
      $region39: #{tpu_custom_call.1} parent=5 // pred_region
        // Predicated region
        $region41: #{tpu_custom_call.1} parent=39 // pred_check
          %p258 = pneg %p37
        $region42: #{tpu_custom_call.1} parent=39 // pred_check_branch
          %260 = sbr.rel (%p258) target = $region44
        $region43: #{tpu_custom_call.1} parent=39 // pred_region
          %s261 = smul.u32 3, %s17
          %p262 = scmp.lt.s32.totalorder %s261, 5
          %s263 = scalar_select %p262, %s261, 5
          %s264 = smul.addr %s263, 4
          %s265 = smul.addr %s264, 8
          %s266 = scalar_lea.vmem %s0, %s265
          %s267 = smul.u32 3, %s17
        $region44: #{tpu_custom_call.1} parent=39 // pred_fallthru
          _
        // Predicated region
        $region45: #{tpu_custom_call.1} parent=39 // pred_check
          %p268 = pneg %p63
        $region46: #{tpu_custom_call.1} parent=39 // pred_check_branch
          %270 = sbr.rel (%p268) target = $region48
        $region47: #{tpu_custom_call.1} parent=39 // pred_region
          %s271 = smul.u32 3, %s17
          %p272 = scmp.lt.s32.totalorder %s271, 5
          %s273 = scalar_select %p272, %s271, 5
          %s274 = smul.addr %s273, 6
          %s275 = smul.addr %s274, 8
          %s276 = scalar_lea.vmem %s1, %s275
          %s277 = smul.u32 3, %s17
        $region48: #{tpu_custom_call.1} parent=39 // pred_fallthru
          _
      $region40: #{tpu_custom_call.1} parent=5 // pred_fallthru
        _
      %p278 = scmp.le.s32.totalorder 1, %s17
      %p279 = scmp.lt.s32.totalorder %s17, 3
      %p280 = pnand %p278, %p279
      %p281 = pneg %p280
      // Predicated region
      $region49: #{tpu_custom_call.1} parent=5 // pred_check
        _
      $region50: #{tpu_custom_call.1} parent=5 // pred_check_branch
        %283 = sbr.rel (%p280) target = $region52
      $region51: #{tpu_custom_call.1} parent=5 // pred_region
        %s284 = ssub.s32 %s17, 1
        %s285 = smul.u32 3, %s22
        %p286 = scmp.lt.s32.totalorder %s285, 5
        %s287 = scalar_select %p286, %s285, 5
        %s288 = smul.addr %s287, 4
        %s289 = smul.addr %s288, 8
        %s290 = scalar_lea.vmem %s0, %s289
        %p291 = pneg %p43
        %p292 = pneg %p40
        %s293 = smul.u32 3, %s22
        %p294 = scmp.lt.s32.totalorder %s293, 5
        %s295 = scalar_select %p294, %s293, 5
        %s296 = smul.addr %s295, 6
        %s297 = smul.addr %s296, 8
        %s298 = scalar_lea.vmem %s1, %s297
        %p299 = pneg %p69
        %p300 = pneg %p66
        %p301 = pneg %p90
        %p302 = pneg %p87
        %p303 = pneg %p111
        %p304 = pneg %p108
        %p305 = pneg %p132
        %p306 = pneg %p129
        %p307 = pneg %p153
        %p308 = pneg %p150
        %p309 = pneg %p174
        %p310 = pneg %p171
        %p311 = pneg %p195
        %p312 = pneg %p192
        %p313 = pneg %p221
        %p314 = pneg %p218
        %s315 = sand.u32 %s208, 1
        %s316 = scalar_lea.sflag [#allocation3], %s315
        %s317 = sand.u32 %s208, 1
        %s318 = scalar_lea.vmem [#allocation2], %s317
        %s319 = smul.u32 3, %s22
        %p320 = scmp.lt.s32.totalorder %s319, 5
        %s321 = scalar_select %p320, %s319, 5
        %s322 = smul.addr %s321, 4
        %s323 = smul.addr %s322, 8
        %s324 = scalar_lea.vmem %s0, %s323
        %s325 = smul.u32 3, %s22
        %s326 = smul.u32 3, %s22
        %p327 = scmp.lt.s32.totalorder %s326, 5
        %s328 = scalar_select %p327, %s326, 5
        %s329 = smul.addr %s328, 6
        %s330 = smul.addr %s329, 8
        %s331 = scalar_lea.vmem %s1, %s330
        %s332 = smul.u32 3, %s22
        %v333 = vld [vmem:[%s7] sm:$0xff]
        %v334 = vld [vmem:[%s7 + $0x8] sm:$0xff]
        %v335 = vld [vmem:[%s324] sm:$0xff]
        %v336 = vld [vmem:[%s324 + $0x8] sm:$0xff]
        %v337 = vld [vmem:[%s324 + $0x10] sm:$0xff]
        %v338 = vld [vmem:[%s324 + $0x18] sm:$0xff]
        %v339 = vld [vmem:[%s324 + $0x20] sm:$0xff]
        %v340 = vld [vmem:[%s324 + $0x28] sm:$0xff]
        %v341 = vld [vmem:[%s324 + $0x30] sm:$0xff]
        %v342 = vld [vmem:[%s324 + $0x38] sm:$0xff]
        %v343 = vld [vmem:[%s324 + $0x40] sm:$0xff]
        %v344 = vld [vmem:[%s324 + $0x48] sm:$0xff]
        %v345 = vld [vmem:[%s324 + $0x50] sm:$0xff]
        %v346 = vld [vmem:[%s324 + $0x58] sm:$0xff]
        %v347 = vld [vmem:[%s331] sm:$0xff]
        %v348 = vld [vmem:[%s331 + $0x8] sm:$0xff]
        %v349 = vld [vmem:[%s331 + $0x10] sm:$0xff]
        %v350 = vld [vmem:[%s331 + $0x18] sm:$0xff]
        %v351 = vld [vmem:[%s331 + $0x20] sm:$0xff]
        %v352 = vld [vmem:[%s331 + $0x28] sm:$0xff]
        %v353 = vld [vmem:[%s331 + $0x30] sm:$0xff]
        %v354 = vld [vmem:[%s331 + $0x38] sm:$0xff]
        %v355 = vld [vmem:[%s331 + $0x40] sm:$0xff]
        %v356 = vld [vmem:[%s331 + $0x48] sm:$0xff]
        %v357 = vld [vmem:[%s331 + $0x50] sm:$0xff]
        %v358 = vld [vmem:[%s331 + $0x58] sm:$0xff]
        %v359 = vld [vmem:[%s331 + $0x60] sm:$0xff]
        %v360 = vld [vmem:[%s331 + $0x68] sm:$0xff]
        %v361 = vld [vmem:[%s331 + $0x70] sm:$0xff]
        %v362 = vld [vmem:[%s331 + $0x78] sm:$0xff]
        %v363 = vld [vmem:[%s331 + $0x80] sm:$0xff]
        %v364 = vld [vmem:[%s331 + $0x88] sm:$0xff]
        %v365 = vld [vmem:[%s2] sm:$0xff]
        %v366 = vld [vmem:[%s2 + $0x8] sm:$0xff]
        %v367 = vld [vmem:[%s2 + $0x10] sm:$0xff]
        %v368 = vld [vmem:[%s2 + $0x18] sm:$0xff]
        %v369 = vld [vmem:[%s2 + $0x20] sm:$0xff]
        %v370 = vld [vmem:[%s2 + $0x28] sm:$0xff]
        %v371 = vld [vmem:[%s2 + $0x30] sm:$0xff]
        %v372 = vld [vmem:[%s2 + $0x38] sm:$0xff]
        %v373 = vld [vmem:[%s2 + $0x40] sm:$0xff]
        %v374 = vld [vmem:[%s2 + $0x48] sm:$0xff]
        %v375 = vld [vmem:[%s2 + $0x50] sm:$0xff]
        %v376 = vld [vmem:[%s2 + $0x58] sm:$0xff]
        %v377 = vld [vmem:[%s2 + $0x60] sm:$0xff]
        %v378 = vld [vmem:[%s2 + $0x68] sm:$0xff]
        %v379 = vld [vmem:[%s2 + $0x70] sm:$0xff]
        %v380 = vld [vmem:[%s2 + $0x78] sm:$0xff]
        %v381 = vld [vmem:[%s2 + $0x80] sm:$0xff]
        %v382 = vld [vmem:[%s2 + $0x88] sm:$0xff]
        %v383 = vld [vmem:[%s2 + $0x90] sm:$0xff]
        %v384 = vld [vmem:[%s2 + $0x98] sm:$0xff]
        %v385 = vld [vmem:[%s2 + $0xa0] sm:$0xff]
        %v386 = vld [vmem:[%s2 + $0xa8] sm:$0xff]
        %v387 = vld [vmem:[%s2 + $0xb0] sm:$0xff]
        %v388 = vld [vmem:[%s2 + $0xb8] sm:$0xff]
        %v389 = vld [vmem:[%s2 + $0xc0] sm:$0xff]
        %v390 = vld [vmem:[%s2 + $0xc8] sm:$0xff]
        %v391 = vld [vmem:[%s2 + $0xd0] sm:$0xff]
        %v392 = vld [vmem:[%s2 + $0xd8] sm:$0xff]
        %v393 = vld [vmem:[%s2 + $0xe0] sm:$0xff]
        %v394 = vld [vmem:[%s2 + $0xe8] sm:$0xff]
        %v395 = vld [vmem:[%s2 + $0xf0] sm:$0xff]
        %v396 = vld [vmem:[%s2 + $0xf8] sm:$0xff]
        %v397 = vld [vmem:[%s2 + $0x100] sm:$0xff]
        %v398 = vld [vmem:[%s2 + $0x108] sm:$0xff]
        %v399 = vld [vmem:[%s2 + $0x110] sm:$0xff]
        %v400 = vld [vmem:[%s2 + $0x118] sm:$0xff]
        %v401 = vld [vmem:[%s2 + $0x120] sm:$0xff]
        %v402 = vld [vmem:[%s2 + $0x128] sm:$0xff]
        %v403 = vld [vmem:[%s2 + $0x130] sm:$0xff]
        %v404 = vld [vmem:[%s2 + $0x138] sm:$0xff]
        %v405 = vld [vmem:[%s2 + $0x140] sm:$0xff]
        %v406 = vld [vmem:[%s2 + $0x148] sm:$0xff]
        %v407 = vld [vmem:[%s2 + $0x150] sm:$0xff]
        %v408 = vld [vmem:[%s2 + $0x158] sm:$0xff]
        %v409 = vld [vmem:[%s2 + $0x160] sm:$0xff]
        %v410 = vld [vmem:[%s2 + $0x168] sm:$0xff]
        %v411 = vld [vmem:[%s2 + $0x170] sm:$0xff]
        %v412 = vld [vmem:[%s2 + $0x178] sm:$0xff]
        %v413 = vld [vmem:[%s2 + $0x180] sm:$0xff]
        %v414 = vld [vmem:[%s2 + $0x188] sm:$0xff]
        %v415 = vld [vmem:[%s3] sm:$0xff]
        %v416 = vld [vmem:[%s3 + $0x8] sm:$0xff]
        %v417 = vld [vmem:[%s3 + $0x10] sm:$0xff]
        %v418 = vld [vmem:[%s3 + $0x18] sm:$0xff]
        %v419 = vld [vmem:[%s3 + $0x20] sm:$0xff]
        %v420 = vld [vmem:[%s3 + $0x28] sm:$0xff]
        %v421 = vld [vmem:[%s3 + $0x30] sm:$0xff]
        %v422 = vld [vmem:[%s3 + $0x38] sm:$0xff]
        %v423 = vld [vmem:[%s3 + $0x40] sm:$0xff]
        %v424 = vld [vmem:[%s3 + $0x48] sm:$0xff]
        %v425 = vld [vmem:[%s3 + $0x50] sm:$0xff]
        %v426 = vld [vmem:[%s3 + $0x58] sm:$0xff]
        %v427 = vld [vmem:[%s3 + $0x60] sm:$0xff]
        %v428 = vld [vmem:[%s3 + $0x68] sm:$0xff]
        %v429 = vld [vmem:[%s3 + $0x70] sm:$0xff]
        %v430 = vld [vmem:[%s3 + $0x78] sm:$0xff]
        %v431 = vld [vmem:[%s3 + $0x80] sm:$0xff]
        %v432 = vld [vmem:[%s3 + $0x88] sm:$0xff]
        %v433 = vld [vmem:[%s3 + $0x90] sm:$0xff]
        %v434 = vld [vmem:[%s3 + $0x98] sm:$0xff]
        %v435 = vld [vmem:[%s3 + $0xa0] sm:$0xff]
        %v436 = vld [vmem:[%s3 + $0xa8] sm:$0xff]
        %v437 = vld [vmem:[%s3 + $0xb0] sm:$0xff]
        %v438 = vld [vmem:[%s3 + $0xb8] sm:$0xff]
        %v439 = vld [vmem:[%s3 + $0xc0] sm:$0xff]
        %v440 = vld [vmem:[%s3 + $0xc8] sm:$0xff]
        %v441 = vld [vmem:[%s3 + $0xd0] sm:$0xff]
        %v442 = vld [vmem:[%s3 + $0xd8] sm:$0xff]
        %v443 = vld [vmem:[%s3 + $0xe0] sm:$0xff]
        %v444 = vld [vmem:[%s3 + $0xe8] sm:$0xff]
        %v445 = vld [vmem:[%s3 + $0xf0] sm:$0xff]
        %v446 = vld [vmem:[%s3 + $0xf8] sm:$0xff]
        %v447 = vld [vmem:[%s3 + $0x100] sm:$0xff]
        %v448 = vld [vmem:[%s3 + $0x108] sm:$0xff]
        %v449 = vld [vmem:[%s3 + $0x110] sm:$0xff]
        %v450 = vld [vmem:[%s3 + $0x118] sm:$0xff]
        %v451 = vld [vmem:[%s3 + $0x120] sm:$0xff]
        %v452 = vld [vmem:[%s3 + $0x128] sm:$0xff]
        %v453 = vld [vmem:[%s3 + $0x130] sm:$0xff]
        %v454 = vld [vmem:[%s3 + $0x138] sm:$0xff]
        %v455 = vld [vmem:[%s3 + $0x140] sm:$0xff]
        %v456 = vld [vmem:[%s3 + $0x148] sm:$0xff]
        %v457 = vld [vmem:[%s3 + $0x150] sm:$0xff]
        %v458 = vld [vmem:[%s3 + $0x158] sm:$0xff]
        %v459 = vld [vmem:[%s3 + $0x160] sm:$0xff]
        %v460 = vld [vmem:[%s3 + $0x168] sm:$0xff]
        %v461 = vld [vmem:[%s3 + $0x170] sm:$0xff]
        %v462 = vld [vmem:[%s3 + $0x178] sm:$0xff]
        %v463 = vld [vmem:[%s3 + $0x180] sm:$0xff]
        %v464 = vld [vmem:[%s3 + $0x188] sm:$0xff]
        %v465 = vld [vmem:[%s3 + $0x190] sm:$0xff]
        %v466 = vld [vmem:[%s3 + $0x198] sm:$0xff]
        %v467 = vld [vmem:[%s3 + $0x1a0] sm:$0xff]
        %v468 = vld [vmem:[%s3 + $0x1a8] sm:$0xff]
        %v469 = vld [vmem:[%s3 + $0x1b0] sm:$0xff]
        %v470 = vld [vmem:[%s3 + $0x1b8] sm:$0xff]
        %v471 = vld [vmem:[%s3 + $0x1c0] sm:$0xff]
        %v472 = vld [vmem:[%s3 + $0x1c8] sm:$0xff]
        %v473 = vld [vmem:[%s3 + $0x1d0] sm:$0xff]
        %v474 = vld [vmem:[%s3 + $0x1d8] sm:$0xff]
        %v475 = vld [vmem:[%s3 + $0x1e0] sm:$0xff]
        %v476 = vld [vmem:[%s3 + $0x1e8] sm:$0xff]
        %v477 = vld [vmem:[%s3 + $0x1f0] sm:$0xff]
        %v478 = vld [vmem:[%s3 + $0x1f8] sm:$0xff]
        %v479 = vld [vmem:[%s3 + $0x200] sm:$0xff]
        %v480 = vld [vmem:[%s3 + $0x208] sm:$0xff]
        %v481 = vld [vmem:[%s3 + $0x210] sm:$0xff]
        %v482 = vld [vmem:[%s3 + $0x218] sm:$0xff]
        %v483 = vld [vmem:[%s3 + $0x220] sm:$0xff]
        %v484 = vld [vmem:[%s3 + $0x228] sm:$0xff]
        %v485 = vld [vmem:[%s3 + $0x230] sm:$0xff]
        %v486 = vld [vmem:[%s3 + $0x238] sm:$0xff]
        %v487 = vld [vmem:[%s3 + $0x240] sm:$0xff]
        %v488 = vld [vmem:[%s3 + $0x248] sm:$0xff]
        %v489 = vld [vmem:[%s3 + $0x250] sm:$0xff]
        %v490 = vld [vmem:[%s3 + $0x258] sm:$0xff]
        %v491 = vld [vmem:[%s3 + $0x260] sm:$0xff]
        %v492 = vld [vmem:[%s3 + $0x268] sm:$0xff]
        %v493 = vld [vmem:[%s3 + $0x270] sm:$0xff]
        %v494 = vld [vmem:[%s3 + $0x278] sm:$0xff]
        %v495 = vld [vmem:[%s3 + $0x280] sm:$0xff]
        %v496 = vld [vmem:[%s3 + $0x288] sm:$0xff]
        %v497 = vld [vmem:[%s3 + $0x290] sm:$0xff]
        %v498 = vld [vmem:[%s3 + $0x298] sm:$0xff]
        %v499 = vld [vmem:[%s3 + $0x2a0] sm:$0xff]
        %v500 = vld [vmem:[%s3 + $0x2a8] sm:$0xff]
        %v501 = vld [vmem:[%s3 + $0x2b0] sm:$0xff]
        %v502 = vld [vmem:[%s3 + $0x2b8] sm:$0xff]
        %v503 = vld [vmem:[%s3 + $0x2c0] sm:$0xff]
        %v504 = vld [vmem:[%s3 + $0x2c8] sm:$0xff]
        %v505 = vld [vmem:[%s3 + $0x2d0] sm:$0xff]
        %v506 = vld [vmem:[%s3 + $0x2d8] sm:$0xff]
        %v507 = vld [vmem:[%s3 + $0x2e0] sm:$0xff]
        %v508 = vld [vmem:[%s3 + $0x2e8] sm:$0xff]
        %v509 = vld [vmem:[%s3 + $0x2f0] sm:$0xff]
        %v510 = vld [vmem:[%s3 + $0x2f8] sm:$0xff]
        %511 = vmatprep.subr.mxu0 0.0
        %512 = vmatpush1.msra.mxu0 %v430
        %513 = vmatprep.subr.mxu0 0.0
        %514 = vmatpush1.msra.mxu0 %v429
        %515 = vmatprep.subr.mxu0 0.0
        %516 = vmatpush1.msra.mxu0 %v428
        %517 = vmatprep.subr.mxu0 0.0
        %518 = vmatpush1.msra.mxu0 %v427
        %519 = vmatprep.subr.mxu0 0.0
        %520 = vmatpush1.msra.mxu0 %v426
        %521 = vmatprep.subr.mxu0 0.0
        %522 = vmatpush1.msra.mxu0 %v425
        %523 = vmatprep.subr.mxu0 0.0
        %524 = vmatpush1.msra.mxu0 %v424
        %525 = vmatprep.subr.mxu0 0.0
        %526 = vmatpush1.msra.mxu0 %v423
        %527 = vmatprep.subr.mxu0 0.0
        %528 = vmatpush1.msra.mxu0 %v422
        %529 = vmatprep.subr.mxu0 0.0
        %530 = vmatpush1.msra.mxu0 %v421
        %531 = vmatprep.subr.mxu0 0.0
        %532 = vmatpush1.msra.mxu0 %v420
        %533 = vmatprep.subr.mxu0 0.0
        %534 = vmatpush1.msra.mxu0 %v419
        %535 = vmatprep.subr.mxu0 0.0
        %536 = vmatpush1.msra.mxu0 %v418
        %537 = vmatprep.subr.mxu0 0.0
        %538 = vmatpush1.msra.mxu0 %v417
        %539 = vmatprep.subr.mxu0 0.0
        %540 = vmatpush1.msra.mxu0 %v416
        %541 = vmatprep.subr.mxu0 0.0
        %542 = vmatpush1.msra.mxu0 %v415
        %543 = vmatprep.subr.mxu0 0.0
        %544 = vmatpush2.msra.mxu0 %v446
        %545 = vmatprep.subr.mxu0 0.0
        %546 = vmatpush2.msra.mxu0 %v445
        %547 = vmatprep.subr.mxu0 0.0
        %548 = vmatpush2.msra.mxu0 %v444
        %549 = vmatprep.subr.mxu0 0.0
        %550 = vmatpush2.msra.mxu0 %v443
        %551 = vmatprep.subr.mxu0 0.0
        %552 = vmatpush2.msra.mxu0 %v442
        %553 = vmatprep.subr.mxu0 0.0
        %554 = vmatpush2.msra.mxu0 %v441
        %555 = vmatprep.subr.mxu0 0.0
        %556 = vmatpush2.msra.mxu0 %v440
        %557 = vmatprep.subr.mxu0 0.0
        %558 = vmatpush2.msra.mxu0 %v439
        %559 = vmatprep.subr.mxu0 0.0
        %560 = vmatpush2.msra.mxu0 %v438
        %561 = vmatprep.subr.mxu0 0.0
        %562 = vmatpush2.msra.mxu0 %v437
        %563 = vmatprep.subr.mxu0 0.0
        %564 = vmatpush2.msra.mxu0 %v436
        %565 = vmatprep.subr.mxu0 0.0
        %566 = vmatpush2.msra.mxu0 %v435
        %567 = vmatprep.subr.mxu0 0.0
        %568 = vmatpush2.msra.mxu0 %v434
        %569 = vmatprep.subr.mxu0 0.0
        %570 = vmatpush2.msra.mxu0 %v433
        %571 = vmatprep.subr.mxu0 0.0
        %572 = vmatpush2.msra.mxu0 %v432
        %573 = vmatprep.subr.mxu0 0.0
        %574 = vmatpush2.msra.mxu0 %v431
        %575 = vmatprep.mubr.f32.mxu0 %v348
        %576 = vmatmul.mubr.f32.gmra.mxu0 %v347
        %v577 = vpop.f32.mrf.mxu0
        %v578 = vadd.f32 0.0, %v577
        %v579 = vpop.f32.mrf.mxu0
        %580 = vmatprep.mubr.f32.mxu0 %v354
        %581 = vmatmul.mubr.f32.gmra.mxu0 %v353
        %v582 = vpop.f32.mrf.mxu0
        %v583 = vadd.f32 0.0, %v582
        %v584 = vpop.f32.mrf.mxu0
        %585 = vmatprep.mubr.f32.mxu0 %v360
        %586 = vmatmul.mubr.f32.gmra.mxu0 %v359
        %v587 = vpop.f32.mrf.mxu0
        %v588 = vadd.f32 0.0, %v587
        %v589 = vpop.f32.mrf.mxu0
        %590 = vdwg.mxu0
        %591 = vmatprep.subr.mxu0 0.0
        %592 = vmatpush1.msra.mxu0 %v462
        %593 = vmatprep.subr.mxu0 0.0
        %594 = vmatpush1.msra.mxu0 %v461
        %595 = vmatprep.subr.mxu0 0.0
        %596 = vmatpush1.msra.mxu0 %v460
        %597 = vmatprep.subr.mxu0 0.0
        %598 = vmatpush1.msra.mxu0 %v459
        %599 = vmatprep.subr.mxu0 0.0
        %600 = vmatpush1.msra.mxu0 %v458
        %601 = vmatprep.subr.mxu0 0.0
        %602 = vmatpush1.msra.mxu0 %v457
        %603 = vmatprep.subr.mxu0 0.0
        %604 = vmatpush1.msra.mxu0 %v456
        %605 = vmatprep.subr.mxu0 0.0
        %606 = vmatpush1.msra.mxu0 %v455
        %607 = vmatprep.subr.mxu0 0.0
        %608 = vmatpush1.msra.mxu0 %v454
        %609 = vmatprep.subr.mxu0 0.0
        %610 = vmatpush1.msra.mxu0 %v453
        %611 = vmatprep.subr.mxu0 0.0
        %612 = vmatpush1.msra.mxu0 %v452
        %613 = vmatprep.subr.mxu0 0.0
        %614 = vmatpush1.msra.mxu0 %v451
        %615 = vmatprep.subr.mxu0 0.0
        %616 = vmatpush1.msra.mxu0 %v450
        %617 = vmatprep.subr.mxu0 0.0
        %618 = vmatpush1.msra.mxu0 %v449
        %619 = vmatprep.subr.mxu0 0.0
        %620 = vmatpush1.msra.mxu0 %v448
        %621 = vmatprep.subr.mxu0 0.0
        %622 = vmatpush1.msra.mxu0 %v447
        %623 = vmatprep.subr.mxu0 0.0
        %624 = vmatpush2.msra.mxu0 %v478
        %625 = vmatprep.subr.mxu0 0.0
        %626 = vmatpush2.msra.mxu0 %v477
        %627 = vmatprep.subr.mxu0 0.0
        %628 = vmatpush2.msra.mxu0 %v476
        %629 = vmatprep.subr.mxu0 0.0
        %630 = vmatpush2.msra.mxu0 %v475
        %631 = vmatprep.subr.mxu0 0.0
        %632 = vmatpush2.msra.mxu0 %v474
        %633 = vmatprep.subr.mxu0 0.0
        %634 = vmatpush2.msra.mxu0 %v473
        %635 = vmatprep.subr.mxu0 0.0
        %636 = vmatpush2.msra.mxu0 %v472
        %637 = vmatprep.subr.mxu0 0.0
        %638 = vmatpush2.msra.mxu0 %v471
        %639 = vmatprep.subr.mxu0 0.0
        %640 = vmatpush2.msra.mxu0 %v470
        %641 = vmatprep.subr.mxu0 0.0
        %642 = vmatpush2.msra.mxu0 %v469
        %643 = vmatprep.subr.mxu0 0.0
        %644 = vmatpush2.msra.mxu0 %v468
        %645 = vmatprep.subr.mxu0 0.0
        %646 = vmatpush2.msra.mxu0 %v467
        %647 = vmatprep.subr.mxu0 0.0
        %648 = vmatpush2.msra.mxu0 %v466
        %649 = vmatprep.subr.mxu0 0.0
        %650 = vmatpush2.msra.mxu0 %v465
        %651 = vmatprep.subr.mxu0 0.0
        %652 = vmatpush2.msra.mxu0 %v464
        %653 = vmatprep.subr.mxu0 0.0
        %654 = vmatpush2.msra.mxu0 %v463
        %655 = vmatprep.mubr.f32.mxu0 %v350
        %656 = vmatmul.mubr.f32.gmra.mxu0 %v349
        %v657 = vpop.f32.mrf.mxu0
        %v658 = vadd.f32 %v578, %v657
        %v659 = vpop.f32.mrf.mxu0
        %660 = vmatprep.mubr.f32.mxu0 %v356
        %661 = vmatmul.mubr.f32.gmra.mxu0 %v355
        %v662 = vpop.f32.mrf.mxu0
        %v663 = vadd.f32 %v583, %v662
        %v664 = vpop.f32.mrf.mxu0
        %665 = vmatprep.mubr.f32.mxu0 %v362
        %666 = vmatmul.mubr.f32.gmra.mxu0 %v361
        %v667 = vpop.f32.mrf.mxu0
        %v668 = vadd.f32 %v588, %v667
        %v669 = vpop.f32.mrf.mxu0
        %670 = vdwg.mxu0
        %671 = vmatprep.subr.mxu0 0.0
        %672 = vmatpush1.msra.mxu0 %v494
        %673 = vmatprep.subr.mxu0 0.0
        %674 = vmatpush1.msra.mxu0 %v493
        %675 = vmatprep.subr.mxu0 0.0
        %676 = vmatpush1.msra.mxu0 %v492
        %677 = vmatprep.subr.mxu0 0.0
        %678 = vmatpush1.msra.mxu0 %v491
        %679 = vmatprep.subr.mxu0 0.0
        %680 = vmatpush1.msra.mxu0 %v490
        %681 = vmatprep.subr.mxu0 0.0
        %682 = vmatpush1.msra.mxu0 %v489
        %683 = vmatprep.subr.mxu0 0.0
        %684 = vmatpush1.msra.mxu0 %v488
        %685 = vmatprep.subr.mxu0 0.0
        %686 = vmatpush1.msra.mxu0 %v487
        %687 = vmatprep.subr.mxu0 0.0
        %688 = vmatpush1.msra.mxu0 %v486
        %689 = vmatprep.subr.mxu0 0.0
        %690 = vmatpush1.msra.mxu0 %v485
        %691 = vmatprep.subr.mxu0 0.0
        %692 = vmatpush1.msra.mxu0 %v484
        %693 = vmatprep.subr.mxu0 0.0
        %694 = vmatpush1.msra.mxu0 %v483
        %695 = vmatprep.subr.mxu0 0.0
        %696 = vmatpush1.msra.mxu0 %v482
        %697 = vmatprep.subr.mxu0 0.0
        %698 = vmatpush1.msra.mxu0 %v481
        %699 = vmatprep.subr.mxu0 0.0
        %700 = vmatpush1.msra.mxu0 %v480
        %701 = vmatprep.subr.mxu0 0.0
        %702 = vmatpush1.msra.mxu0 %v479
        %703 = vmatprep.subr.mxu0 0.0
        %704 = vmatpush2.msra.mxu0 %v510
        %705 = vmatprep.subr.mxu0 0.0
        %706 = vmatpush2.msra.mxu0 %v509
        %707 = vmatprep.subr.mxu0 0.0
        %708 = vmatpush2.msra.mxu0 %v508
        %709 = vmatprep.subr.mxu0 0.0
        %710 = vmatpush2.msra.mxu0 %v507
        %711 = vmatprep.subr.mxu0 0.0
        %712 = vmatpush2.msra.mxu0 %v506
        %713 = vmatprep.subr.mxu0 0.0
        %714 = vmatpush2.msra.mxu0 %v505
        %715 = vmatprep.subr.mxu0 0.0
        %716 = vmatpush2.msra.mxu0 %v504
        %717 = vmatprep.subr.mxu0 0.0
        %718 = vmatpush2.msra.mxu0 %v503
        %719 = vmatprep.subr.mxu0 0.0
        %720 = vmatpush2.msra.mxu0 %v502
        %721 = vmatprep.subr.mxu0 0.0
        %722 = vmatpush2.msra.mxu0 %v501
        %723 = vmatprep.subr.mxu0 0.0
        %724 = vmatpush2.msra.mxu0 %v500
        %725 = vmatprep.subr.mxu0 0.0
        %726 = vmatpush2.msra.mxu0 %v499
        %727 = vmatprep.subr.mxu0 0.0
        %728 = vmatpush2.msra.mxu0 %v498
        %729 = vmatprep.subr.mxu0 0.0
        %730 = vmatpush2.msra.mxu0 %v497
        %731 = vmatprep.subr.mxu0 0.0
        %732 = vmatpush2.msra.mxu0 %v496
        %733 = vmatprep.subr.mxu0 0.0
        %734 = vmatpush2.msra.mxu0 %v495
        %735 = vmatprep.mubr.f32.mxu0 %v352
        %736 = vmatmul.mubr.f32.gmra.mxu0 %v351
        %v737 = vpop.f32.mrf.mxu0
        %v738 = vadd.f32 %v658, %v737
        %v739 = vpop.f32.mrf.mxu0
        %740 = vmatprep.mubr.f32.mxu0 %v358
        %741 = vmatmul.mubr.f32.gmra.mxu0 %v357
        %v742 = vpop.f32.mrf.mxu0
        %v743 = vadd.f32 %v663, %v742
        %v744 = vpop.f32.mrf.mxu0
        %745 = vmatprep.mubr.f32.mxu0 %v364
        %746 = vmatmul.mubr.f32.gmra.mxu0 %v363
        %v747 = vpop.f32.mrf.mxu0
        %v748 = vadd.f32 %v668, %v747
        %v749 = vpop.f32.mrf.mxu0
        %750 = vdwg.mxu0
        %vm751 = vcmask 130048
        %v753 = vsel %vm751, %v338, 0
        %v756 = vsel %vm751, %v342, 0
        %v759 = vsel %vm751, %v346, 0
        %761 = vmatprep.subr.mxu0 0.0
        %762 = vmatpush1.msra.mxu0 %v380
        %763 = vmatprep.subr.mxu0 0.0
        %764 = vmatpush1.msra.mxu0 %v379
        %765 = vmatprep.subr.mxu0 0.0
        %766 = vmatpush1.msra.mxu0 %v378
        %767 = vmatprep.subr.mxu0 0.0
        %768 = vmatpush1.msra.mxu0 %v377
        %769 = vmatprep.subr.mxu0 0.0
        %770 = vmatpush1.msra.mxu0 %v376
        %771 = vmatprep.subr.mxu0 0.0
        %772 = vmatpush1.msra.mxu0 %v375
        %773 = vmatprep.subr.mxu0 0.0
        %774 = vmatpush1.msra.mxu0 %v374
        %775 = vmatprep.subr.mxu0 0.0
        %776 = vmatpush1.msra.mxu0 %v373
        %777 = vmatprep.subr.mxu0 0.0
        %778 = vmatpush1.msra.mxu0 %v372
        %779 = vmatprep.subr.mxu0 0.0
        %780 = vmatpush1.msra.mxu0 %v371
        %781 = vmatprep.subr.mxu0 0.0
        %782 = vmatpush1.msra.mxu0 %v370
        %783 = vmatprep.subr.mxu0 0.0
        %784 = vmatpush1.msra.mxu0 %v369
        %785 = vmatprep.subr.mxu0 0.0
        %786 = vmatpush1.msra.mxu0 %v368
        %787 = vmatprep.subr.mxu0 0.0
        %788 = vmatpush1.msra.mxu0 %v367
        %789 = vmatprep.subr.mxu0 0.0
        %790 = vmatpush1.msra.mxu0 %v366
        %791 = vmatprep.subr.mxu0 0.0
        %792 = vmatpush1.msra.mxu0 %v365
        %793 = vmatprep.subr.mxu0 0.0
        %794 = vmatpush2.msra.mxu0 %v396
        %795 = vmatprep.subr.mxu0 0.0
        %796 = vmatpush2.msra.mxu0 %v395
        %797 = vmatprep.subr.mxu0 0.0
        %798 = vmatpush2.msra.mxu0 %v394
        %799 = vmatprep.subr.mxu0 0.0
        %800 = vmatpush2.msra.mxu0 %v393
        %801 = vmatprep.subr.mxu0 0.0
        %802 = vmatpush2.msra.mxu0 %v392
        %803 = vmatprep.subr.mxu0 0.0
        %804 = vmatpush2.msra.mxu0 %v391
        %805 = vmatprep.subr.mxu0 0.0
        %806 = vmatpush2.msra.mxu0 %v390
        %807 = vmatprep.subr.mxu0 0.0
        %808 = vmatpush2.msra.mxu0 %v389
        %809 = vmatprep.subr.mxu0 0.0
        %810 = vmatpush2.msra.mxu0 %v388
        %811 = vmatprep.subr.mxu0 0.0
        %812 = vmatpush2.msra.mxu0 %v387
        %813 = vmatprep.subr.mxu0 0.0
        %814 = vmatpush2.msra.mxu0 %v386
        %815 = vmatprep.subr.mxu0 0.0
        %816 = vmatpush2.msra.mxu0 %v385
        %817 = vmatprep.subr.mxu0 0.0
        %818 = vmatpush2.msra.mxu0 %v384
        %819 = vmatprep.subr.mxu0 0.0
        %820 = vmatpush2.msra.mxu0 %v383
        %821 = vmatprep.subr.mxu0 0.0
        %822 = vmatpush2.msra.mxu0 %v382
        %823 = vmatprep.subr.mxu0 0.0
        %824 = vmatpush2.msra.mxu0 %v381
        %825 = vmatprep.mubr.f32.mxu0 %v336
        %826 = vmatmul.mubr.f32.gmra.mxu0 %v335
        %v827 = vpop.f32.mrf.mxu0
        %v828 = vadd.f32 %v738, %v827
        %v829 = vpop.f32.mrf.mxu0
        %830 = vmatprep.mubr.f32.mxu0 %v340
        %831 = vmatmul.mubr.f32.gmra.mxu0 %v339
        %v832 = vpop.f32.mrf.mxu0
        %v833 = vadd.f32 %v743, %v832
        %v834 = vpop.f32.mrf.mxu0
        %835 = vmatprep.mubr.f32.mxu0 %v344
        %836 = vmatmul.mubr.f32.gmra.mxu0 %v343
        %v837 = vpop.f32.mrf.mxu0
        %v838 = vadd.f32 %v748, %v837
        %v839 = vpop.f32.mrf.mxu0
        %840 = vdwg.mxu0
        %841 = vmatprep.subr.mxu0 0.0
        %842 = vmatpush1.msra.mxu0 %v412
        %843 = vmatprep.subr.mxu0 0.0
        %844 = vmatpush1.msra.mxu0 %v411
        %845 = vmatprep.subr.mxu0 0.0
        %846 = vmatpush1.msra.mxu0 %v410
        %847 = vmatprep.subr.mxu0 0.0
        %848 = vmatpush1.msra.mxu0 %v409
        %849 = vmatprep.subr.mxu0 0.0
        %850 = vmatpush1.msra.mxu0 %v408
        %851 = vmatprep.subr.mxu0 0.0
        %852 = vmatpush1.msra.mxu0 %v407
        %853 = vmatprep.subr.mxu0 0.0
        %854 = vmatpush1.msra.mxu0 %v406
        %855 = vmatprep.subr.mxu0 0.0
        %856 = vmatpush1.msra.mxu0 %v405
        %857 = vmatprep.subr.mxu0 0.0
        %858 = vmatpush1.msra.mxu0 %v404
        %859 = vmatprep.subr.mxu0 0.0
        %860 = vmatpush1.msra.mxu0 %v403
        %861 = vmatprep.subr.mxu0 0.0
        %862 = vmatpush1.msra.mxu0 %v402
        %863 = vmatprep.subr.mxu0 0.0
        %864 = vmatpush1.msra.mxu0 %v401
        %865 = vmatprep.subr.mxu0 0.0
        %866 = vmatpush1.msra.mxu0 %v400
        %867 = vmatprep.subr.mxu0 0.0
        %868 = vmatpush1.msra.mxu0 %v399
        %869 = vmatprep.subr.mxu0 0.0
        %870 = vmatpush1.msra.mxu0 %v398
        %871 = vmatprep.subr.mxu0 0.0
        %872 = vmatpush1.msra.mxu0 %v397
        %873 = vmatprep.subr.mxu0 0.0
        %874 = vmatpush2.msra.mxu0 0.0
        %875 = vmatprep.subr.mxu0 0.0
        %876 = vmatpush2.msra.mxu0 0.0
        %877 = vmatprep.subr.mxu0 0.0
        %878 = vmatpush2.msra.mxu0 0.0
        %879 = vmatprep.subr.mxu0 0.0
        %880 = vmatpush2.msra.mxu0 0.0
        %881 = vmatprep.subr.mxu0 0.0
        %882 = vmatpush2.msra.mxu0 0.0
        %883 = vmatprep.subr.mxu0 0.0
        %884 = vmatpush2.msra.mxu0 0.0
        %885 = vmatprep.subr.mxu0 0.0
        %886 = vmatpush2.msra.mxu0 0.0
        %887 = vmatprep.subr.mxu0 0.0
        %888 = vmatpush2.msra.mxu0 0.0
        %889 = vmatprep.subr.mxu0 0.0
        %890 = vmatpush2.msra.mxu0 0.0
        %891 = vmatprep.subr.mxu0 0.0
        %892 = vmatpush2.msra.mxu0 0.0
        %893 = vmatprep.subr.mxu0 0.0
        %894 = vmatpush2.msra.mxu0 0.0
        %895 = vmatprep.subr.mxu0 0.0
        %896 = vmatpush2.msra.mxu0 0.0
        %897 = vmatprep.subr.mxu0 0.0
        %898 = vmatpush2.msra.mxu0 0.0
        %899 = vmatprep.subr.mxu0 0.0
        %900 = vmatpush2.msra.mxu0 0.0
        %901 = vmatprep.subr.mxu0 0.0
        %902 = vmatpush2.msra.mxu0 %v414
        %903 = vmatprep.subr.mxu0 0.0
        %904 = vmatpush2.msra.mxu0 %v413
        %905 = vmatprep.mubr.f32.mxu0 %v753
        %906 = vmatmul.mubr.f32.gmra.mxu0 %v337
        %v907 = vpop.f32.mrf.mxu0
        %v908 = vadd.f32 %v828, %v907
        %v909 = vpop.f32.mrf.mxu0
        %910 = vmatprep.mubr.f32.mxu0 %v756
        %911 = vmatmul.mubr.f32.gmra.mxu0 %v341
        %v912 = vpop.f32.mrf.mxu0
        %v913 = vadd.f32 %v833, %v912
        %v914 = vpop.f32.mrf.mxu0
        %915 = vmatprep.mubr.f32.mxu0 %v759
        %916 = vmatmul.mubr.f32.gmra.mxu0 %v345
        %v917 = vpop.f32.mrf.mxu0
        %v918 = vadd.f32 %v838, %v917
        %v919 = vpop.f32.mrf.mxu0
        %920 = vdwg.mxu0
        %v921 = vlaneseq
        %v922 = vshrl.u32 %v921, 7
        %v923 = vsub.s32 0, %v922
        %v924 = vrot.slane %v333, %v923
        %v925 = vadd.f32 %v908, %v924
        %v926 = vadd.f32 %v913, %v924
        %v927 = vadd.f32 %v918, %v924
        %v928 = vmax.f32 %v925, 0.0
        %v929 = vmax.f32 %v926, 0.0
        %v930 = vmax.f32 %v927, 0.0
        %v931 = vld [vmem:[%s4] sm:$0xff]
        %v932 = vld [vmem:[%s4 + $0x8] sm:$0xff]
        %v933 = vld [vmem:[%s4 + $0x10] sm:$0xff]
        %v934 = vld [vmem:[%s4 + $0x18] sm:$0xff]
        %v935 = vld [vmem:[%s4 + $0x20] sm:$0xff]
        %v936 = vld [vmem:[%s4 + $0x28] sm:$0xff]
        %v937 = vld [vmem:[%s4 + $0x30] sm:$0xff]
        %v938 = vld [vmem:[%s4 + $0x38] sm:$0xff]
        %v939 = vlaneseq
        %v940 = vshrl.u32 %v939, 7
        %v941 = vsub.s32 1, %v940
        %v942 = vrot.slane %v333, %v941
        %vm943 = vcmask 523264
        %v945 = vsel %vm943, %v928, 0
        %v948 = vsel %vm943, %v929, 0
        %v951 = vsel %vm943, %v930, 0
        %953 = vmatprep.subr.mxu0 0.0
        %954 = vmatpush1.msra.mxu0 0.0
        %955 = vmatprep.subr.mxu0 0.0
        %956 = vmatpush1.msra.mxu0 0.0
        %957 = vmatprep.subr.mxu0 0.0
        %958 = vmatpush1.msra.mxu0 0.0
        %959 = vmatprep.subr.mxu0 0.0
        %960 = vmatpush1.msra.mxu0 0.0
        %961 = vmatprep.subr.mxu0 0.0
        %962 = vmatpush1.msra.mxu0 0.0
        %963 = vmatprep.subr.mxu0 0.0
        %964 = vmatpush1.msra.mxu0 0.0
        %965 = vmatprep.subr.mxu0 0.0
        %966 = vmatpush1.msra.mxu0 0.0
        %967 = vmatprep.subr.mxu0 0.0
        %968 = vmatpush1.msra.mxu0 0.0
        %969 = vmatprep.subr.mxu0 0.0
        %970 = vmatpush1.msra.mxu0 %v938
        %971 = vmatprep.subr.mxu0 0.0
        %972 = vmatpush1.msra.mxu0 %v937
        %973 = vmatprep.subr.mxu0 0.0
        %974 = vmatpush1.msra.mxu0 %v936
        %975 = vmatprep.subr.mxu0 0.0
        %976 = vmatpush1.msra.mxu0 %v935
        %977 = vmatprep.subr.mxu0 0.0
        %978 = vmatpush1.msra.mxu0 %v934
        %979 = vmatprep.subr.mxu0 0.0
        %980 = vmatpush1.msra.mxu0 %v933
        %981 = vmatprep.subr.mxu0 0.0
        %982 = vmatpush1.msra.mxu0 %v932
        %983 = vmatprep.subr.mxu0 0.0
        %984 = vmatpush1.msra.mxu0 %v931
        %985 = vmatprep.subr.mxu0 0.0
        %986 = vmatpush2.msra.mxu0 0.0
        %987 = vmatprep.subr.mxu0 0.0
        %988 = vmatpush2.msra.mxu0 0.0
        %989 = vmatprep.subr.mxu0 0.0
        %990 = vmatpush2.msra.mxu0 0.0
        %991 = vmatprep.subr.mxu0 0.0
        %992 = vmatpush2.msra.mxu0 0.0
        %993 = vmatprep.subr.mxu0 0.0
        %994 = vmatpush2.msra.mxu0 0.0
        %995 = vmatprep.subr.mxu0 0.0
        %996 = vmatpush2.msra.mxu0 0.0
        %997 = vmatprep.subr.mxu0 0.0
        %998 = vmatpush2.msra.mxu0 0.0
        %999 = vmatprep.subr.mxu0 0.0
        %1000 = vmatpush2.msra.mxu0 0.0
        %1001 = vmatprep.subr.mxu0 0.0
        %1002 = vmatpush2.msra.mxu0 0.0
        %1003 = vmatprep.subr.mxu0 0.0
        %1004 = vmatpush2.msra.mxu0 0.0
        %1005 = vmatprep.subr.mxu0 0.0
        %1006 = vmatpush2.msra.mxu0 0.0
        %1007 = vmatprep.subr.mxu0 0.0
        %1008 = vmatpush2.msra.mxu0 0.0
        %1009 = vmatprep.subr.mxu0 0.0
        %1010 = vmatpush2.msra.mxu0 0.0
        %1011 = vmatprep.subr.mxu0 0.0
        %1012 = vmatpush2.msra.mxu0 0.0
        %1013 = vmatprep.subr.mxu0 0.0
        %1014 = vmatpush2.msra.mxu0 0.0
        %1015 = vmatprep.subr.mxu0 0.0
        %1016 = vmatpush2.msra.mxu0 0.0
        %1017 = vmatprep.mubr.f32.mxu0 0.0
        %1018 = vmatmul.mubr.f32.gmra.mxu0 %v945
        %v1019 = vpop.f32.mrf.mxu0
        %v1020 = vadd.f32 %v942, %v1019
        %v1021 = vpop.f32.mrf.mxu0
        %1022 = vmatprep.mubr.f32.mxu0 0.0
        %1023 = vmatmul.mubr.f32.gmra.mxu0 %v948
        %v1024 = vpop.f32.mrf.mxu0
        %v1025 = vadd.f32 %v942, %v1024
        %v1026 = vpop.f32.mrf.mxu0
        %1027 = vmatprep.mubr.f32.mxu0 0.0
        %1028 = vmatmul.mubr.f32.gmra.mxu0 %v951
        %v1029 = vpop.f32.mrf.mxu0
        %v1030 = vadd.f32 %v942, %v1029
        %v1031 = vpop.f32.mrf.mxu0
        %1032 = vdwg.mxu0
        %v1033 = vmax.f32 %v1020, 0.0
        %v1034 = vmax.f32 %v1025, 0.0
        %v1035 = vmax.f32 %v1030, 0.0
        %v1036 = vld [vmem:[%s5] sm:$0xff]
        %v1037 = vld [vmem:[%s5 + $0x8] sm:$0xff]
        %v1038 = vld [vmem:[%s5 + $0x10] sm:$0xff]
        %v1039 = vld [vmem:[%s5 + $0x18] sm:$0xff]
        %v1040 = vld [vmem:[%s5 + $0x20] sm:$0xff]
        %v1041 = vld [vmem:[%s5 + $0x28] sm:$0xff]
        %v1042 = vld [vmem:[%s5 + $0x30] sm:$0xff]
        %v1043 = vld [vmem:[%s5 + $0x38] sm:$0xff]
        %v1044 = vld [vmem:[%s5 + $0x40] sm:$0xff]
        %v1045 = vld [vmem:[%s5 + $0x48] sm:$0xff]
        %v1046 = vld [vmem:[%s5 + $0x50] sm:$0xff]
        %v1047 = vld [vmem:[%s5 + $0x58] sm:$0xff]
        %v1048 = vld [vmem:[%s5 + $0x60] sm:$0xff]
        %v1049 = vld [vmem:[%s5 + $0x68] sm:$0xff]
        %v1050 = vld [vmem:[%s5 + $0x70] sm:$0xff]
        %v1051 = vld [vmem:[%s5 + $0x78] sm:$0xff]
        %v1052 = vlaneseq
        %v1053 = vshrl.u32 %v1052, 7
        %v1054 = vsub.s32 2, %v1053
        %v1055 = vrot.slane %v333, %v1054
        %v1056 = vlaneseq
        %v1057 = vshrl.u32 %v1056, 7
        %v1058 = vsub.s32 2, %v1057
        %v1059 = vrot.slane %v334, %v1058
        %v1061 = vsel %vm943, %v1033, 0
        %v1064 = vsel %vm943, %v1034, 0
        %v1067 = vsel %vm943, %v1035, 0
        %1069 = vmatprep.subr.mxu0 0.0
        %1070 = vmatpush1.msra.mxu0 0.0
        %1071 = vmatprep.subr.mxu0 0.0
        %1072 = vmatpush1.msra.mxu0 0.0
        %1073 = vmatprep.subr.mxu0 0.0
        %1074 = vmatpush1.msra.mxu0 0.0
        %1075 = vmatprep.subr.mxu0 0.0
        %1076 = vmatpush1.msra.mxu0 0.0
        %1077 = vmatprep.subr.mxu0 0.0
        %1078 = vmatpush1.msra.mxu0 0.0
        %1079 = vmatprep.subr.mxu0 0.0
        %1080 = vmatpush1.msra.mxu0 0.0
        %1081 = vmatprep.subr.mxu0 0.0
        %1082 = vmatpush1.msra.mxu0 0.0
        %1083 = vmatprep.subr.mxu0 0.0
        %1084 = vmatpush1.msra.mxu0 0.0
        %1085 = vmatprep.subr.mxu0 %v1051
        %1086 = vmatpush1.msra.mxu0 %v1050
        %1087 = vmatprep.subr.mxu0 %v1049
        %1088 = vmatpush1.msra.mxu0 %v1048
        %1089 = vmatprep.subr.mxu0 %v1047
        %1090 = vmatpush1.msra.mxu0 %v1046
        %1091 = vmatprep.subr.mxu0 %v1045
        %1092 = vmatpush1.msra.mxu0 %v1044
        %1093 = vmatprep.subr.mxu0 %v1043
        %1094 = vmatpush1.msra.mxu0 %v1042
        %1095 = vmatprep.subr.mxu0 %v1041
        %1096 = vmatpush1.msra.mxu0 %v1040
        %1097 = vmatprep.subr.mxu0 %v1039
        %1098 = vmatpush1.msra.mxu0 %v1038
        %1099 = vmatprep.subr.mxu0 %v1037
        %1100 = vmatpush1.msra.mxu0 %v1036
        %1101 = vmatprep.subr.mxu0 0.0
        %1102 = vmatpush2.msra.mxu0 0.0
        %1103 = vmatprep.subr.mxu0 0.0
        %1104 = vmatpush2.msra.mxu0 0.0
        %1105 = vmatprep.subr.mxu0 0.0
        %1106 = vmatpush2.msra.mxu0 0.0
        %1107 = vmatprep.subr.mxu0 0.0
        %1108 = vmatpush2.msra.mxu0 0.0
        %1109 = vmatprep.subr.mxu0 0.0
        %1110 = vmatpush2.msra.mxu0 0.0
        %1111 = vmatprep.subr.mxu0 0.0
        %1112 = vmatpush2.msra.mxu0 0.0
        %1113 = vmatprep.subr.mxu0 0.0
        %1114 = vmatpush2.msra.mxu0 0.0
        %1115 = vmatprep.subr.mxu0 0.0
        %1116 = vmatpush2.msra.mxu0 0.0
        %1117 = vmatprep.subr.mxu0 0.0
        %1118 = vmatpush2.msra.mxu0 0.0
        %1119 = vmatprep.subr.mxu0 0.0
        %1120 = vmatpush2.msra.mxu0 0.0
        %1121 = vmatprep.subr.mxu0 0.0
        %1122 = vmatpush2.msra.mxu0 0.0
        %1123 = vmatprep.subr.mxu0 0.0
        %1124 = vmatpush2.msra.mxu0 0.0
        %1125 = vmatprep.subr.mxu0 0.0
        %1126 = vmatpush2.msra.mxu0 0.0
        %1127 = vmatprep.subr.mxu0 0.0
        %1128 = vmatpush2.msra.mxu0 0.0
        %1129 = vmatprep.subr.mxu0 0.0
        %1130 = vmatpush2.msra.mxu0 0.0
        %1131 = vmatprep.subr.mxu0 0.0
        %1132 = vmatpush2.msra.mxu0 0.0
        %1133 = vmatprep.mubr.f32.mxu0 0.0
        %1134 = vmatmul.mubr.f32.gmra.mxu0 %v1061
        %v1135 = vpop.f32.mrf.mxu0
        %v1136 = vadd.f32 %v1055, %v1135
        %v1137 = vpop.f32.mrf.mxu0
        %v1138 = vadd.f32 %v1059, %v1137
        %1139 = vmatprep.mubr.f32.mxu0 0.0
        %1140 = vmatmul.mubr.f32.gmra.mxu0 %v1064
        %v1141 = vpop.f32.mrf.mxu0
        %v1142 = vadd.f32 %v1055, %v1141
        %v1143 = vpop.f32.mrf.mxu0
        %v1144 = vadd.f32 %v1059, %v1143
        %1145 = vmatprep.mubr.f32.mxu0 0.0
        %1146 = vmatmul.mubr.f32.gmra.mxu0 %v1067
        %v1147 = vpop.f32.mrf.mxu0
        %v1148 = vadd.f32 %v1055, %v1147
        %v1149 = vpop.f32.mrf.mxu0
        %v1150 = vadd.f32 %v1059, %v1149
        %1151 = vdwg.mxu0
        %v1152 = vmul.f32 %v1136, %v1136
        %v1153 = vmul.f32 %v1142, %v1142
        %v1154 = vmul.f32 %v1148, %v1148
        %1155 = vadd.xlane.f32.xlu0 %v1152
        %v1156 = vpop.xlane.xlu0 %1155
        %1157 = vadd.xlane.f32.xlu0 %v1153
        %v1158 = vpop.xlane.xlu0 %1157
        %1159 = vadd.xlane.f32.xlu0 %v1154
        %v1160 = vpop.xlane.xlu0 %1159
        %v1161 = vrsqrt.pop %v1156
        %v1162 = vmul.f32 %v1156, %v1161
        %vm1163 = vcmp.eq.f32.partialorder %v1156, inf
        %v1164 = vsel %vm1163, %v1156, %v1162
        %vm1165 = vcmp.eq.f32.partialorder %v1156, 0.0
        %v1166 = vand.u32 %v1156, 2147483648
        %v1167 = vsel %vm1165, %v1166, %v1164
        %v1168 = vrsqrt.pop %v1158
        %v1169 = vmul.f32 %v1158, %v1168
        %vm1170 = vcmp.eq.f32.partialorder %v1158, inf
        %v1171 = vsel %vm1170, %v1158, %v1169
        %vm1172 = vcmp.eq.f32.partialorder %v1158, 0.0
        %v1173 = vand.u32 %v1158, 2147483648
        %v1174 = vsel %vm1172, %v1173, %v1171
        %v1175 = vrsqrt.pop %v1160
        %v1176 = vmul.f32 %v1160, %v1175
        %vm1177 = vcmp.eq.f32.partialorder %v1160, inf
        %v1178 = vsel %vm1177, %v1160, %v1176
        %vm1179 = vcmp.eq.f32.partialorder %v1160, 0.0
        %v1180 = vand.u32 %v1160, 2147483648
        %v1181 = vsel %vm1179, %v1180, %v1178
        %v1182 = vmax.f32 %v1167, 1e-12
        %v1183 = vmax.f32 %v1174, 1e-12
        %v1184 = vmax.f32 %v1181, 1e-12
        %v1185 = vrcp.pop %v1182
        %v1186 = vmul.f32 %v1136, %v1185
        %v1187 = vrcp.pop %v1183
        %v1188 = vmul.f32 %v1142, %v1187
        %v1189 = vrcp.pop %v1184
        %v1190 = vmul.f32 %v1148, %v1189
        %v1191 = vmul.f32 %v1138, %v1138
        %v1192 = vmul.f32 %v1144, %v1144
        %v1193 = vmul.f32 %v1150, %v1150
        %1194 = vadd.xlane.f32.xlu0 %v1191
        %v1195 = vpop.xlane.xlu0 %1194
        %1196 = vadd.xlane.f32.xlu0 %v1192
        %v1197 = vpop.xlane.xlu0 %1196
        %1198 = vadd.xlane.f32.xlu0 %v1193
        %v1199 = vpop.xlane.xlu0 %1198
        %v1200 = vrsqrt.pop %v1195
        %v1201 = vmul.f32 %v1195, %v1200
        %vm1202 = vcmp.eq.f32.partialorder %v1195, inf
        %v1203 = vsel %vm1202, %v1195, %v1201
        %vm1204 = vcmp.eq.f32.partialorder %v1195, 0.0
        %v1205 = vand.u32 %v1195, 2147483648
        %v1206 = vsel %vm1204, %v1205, %v1203
        %v1207 = vrsqrt.pop %v1197
        %v1208 = vmul.f32 %v1197, %v1207
        %vm1209 = vcmp.eq.f32.partialorder %v1197, inf
        %v1210 = vsel %vm1209, %v1197, %v1208
        %vm1211 = vcmp.eq.f32.partialorder %v1197, 0.0
        %v1212 = vand.u32 %v1197, 2147483648
        %v1213 = vsel %vm1211, %v1212, %v1210
        %v1214 = vrsqrt.pop %v1199
        %v1215 = vmul.f32 %v1199, %v1214
        %vm1216 = vcmp.eq.f32.partialorder %v1199, inf
        %v1217 = vsel %vm1216, %v1199, %v1215
        %vm1218 = vcmp.eq.f32.partialorder %v1199, 0.0
        %v1219 = vand.u32 %v1199, 2147483648
        %v1220 = vsel %vm1218, %v1219, %v1217
        %v1221 = vmax.f32 %v1206, 1e-12
        %v1222 = vmax.f32 %v1213, 1e-12
        %v1223 = vmax.f32 %v1220, 1e-12
        %v1224 = vrcp.pop %v1221
        %v1225 = vmul.f32 %v1138, %v1224
        %v1226 = vrcp.pop %v1222
        %v1227 = vmul.f32 %v1144, %v1226
        %v1228 = vrcp.pop %v1223
        %v1229 = vmul.f32 %v1150, %v1228
        %v1230 = vld [vmem:[%s6] sm:$0xff]
        %v1231 = vld [vmem:[%s6 + $0x8] sm:$0xff]
        %v1232 = vld [vmem:[%s6 + $0x10] sm:$0xff]
        %v1233 = vld [vmem:[%s6 + $0x18] sm:$0xff]
        %v1234 = vld [vmem:[%s6 + $0x20] sm:$0xff]
        %v1235 = vld [vmem:[%s6 + $0x28] sm:$0xff]
        %v1236 = vld [vmem:[%s6 + $0x30] sm:$0xff]
        %v1237 = vld [vmem:[%s6 + $0x38] sm:$0xff]
        %v1238 = vld [vmem:[%s6 + $0x40] sm:$0xff]
        %v1239 = vld [vmem:[%s6 + $0x48] sm:$0xff]
        %v1240 = vld [vmem:[%s6 + $0x50] sm:$0xff]
        %v1241 = vld [vmem:[%s6 + $0x58] sm:$0xff]
        %v1242 = vld [vmem:[%s6 + $0x60] sm:$0xff]
        %v1243 = vld [vmem:[%s6 + $0x68] sm:$0xff]
        %v1244 = vld [vmem:[%s6 + $0x70] sm:$0xff]
        %v1245 = vld [vmem:[%s6 + $0x78] sm:$0xff]
        %v1246 = vld [vmem:[%s6 + $0x80] sm:$0xff]
        %v1247 = vld [vmem:[%s6 + $0x88] sm:$0xff]
        %v1248 = vld [vmem:[%s6 + $0x90] sm:$0xff]
        %v1249 = vld [vmem:[%s6 + $0x98] sm:$0xff]
        %v1250 = vld [vmem:[%s6 + $0xa0] sm:$0xff]
        %v1251 = vld [vmem:[%s6 + $0xa8] sm:$0xff]
        %v1252 = vld [vmem:[%s6 + $0xb0] sm:$0xff]
        %v1253 = vld [vmem:[%s6 + $0xb8] sm:$0xff]
        %v1254 = vld [vmem:[%s6 + $0xc0] sm:$0xff]
        %v1255 = vld [vmem:[%s6 + $0xc8] sm:$0xff]
        %v1256 = vld [vmem:[%s6 + $0xd0] sm:$0xff]
        %v1257 = vld [vmem:[%s6 + $0xd8] sm:$0xff]
        %v1258 = vld [vmem:[%s6 + $0xe0] sm:$0xff]
        %v1259 = vld [vmem:[%s6 + $0xe8] sm:$0xff]
        %v1260 = vld [vmem:[%s6 + $0xf0] sm:$0xff]
        %v1261 = vld [vmem:[%s6 + $0xf8] sm:$0xff]
        %1262 = vmatprep.subr.mxu0 0.0
        %1263 = vmatpush1.msra.mxu0 %v1261
        %1264 = vmatprep.subr.mxu0 0.0
        %1265 = vmatpush1.msra.mxu0 %v1260
        %1266 = vmatprep.subr.mxu0 0.0
        %1267 = vmatpush1.msra.mxu0 %v1259
        %1268 = vmatprep.subr.mxu0 0.0
        %1269 = vmatpush1.msra.mxu0 %v1258
        %1270 = vmatprep.subr.mxu0 0.0
        %1271 = vmatpush1.msra.mxu0 %v1257
        %1272 = vmatprep.subr.mxu0 0.0
        %1273 = vmatpush1.msra.mxu0 %v1256
        %1274 = vmatprep.subr.mxu0 0.0
        %1275 = vmatpush1.msra.mxu0 %v1255
        %1276 = vmatprep.subr.mxu0 0.0
        %1277 = vmatpush1.msra.mxu0 %v1254
        %1278 = vmatprep.subr.mxu0 0.0
        %1279 = vmatpush1.msra.mxu0 %v1253
        %1280 = vmatprep.subr.mxu0 0.0
        %1281 = vmatpush1.msra.mxu0 %v1252
        %1282 = vmatprep.subr.mxu0 0.0
        %1283 = vmatpush1.msra.mxu0 %v1251
        %1284 = vmatprep.subr.mxu0 0.0
        %1285 = vmatpush1.msra.mxu0 %v1250
        %1286 = vmatprep.subr.mxu0 0.0
        %1287 = vmatpush1.msra.mxu0 %v1249
        %1288 = vmatprep.subr.mxu0 0.0
        %1289 = vmatpush1.msra.mxu0 %v1248
        %1290 = vmatprep.subr.mxu0 0.0
        %1291 = vmatpush1.msra.mxu0 %v1247
        %1292 = vmatprep.subr.mxu0 0.0
        %1293 = vmatpush1.msra.mxu0 %v1246
        %1294 = vmatprep.subr.mxu0 0.0
        %1295 = vmatpush2.msra.mxu0 0.0
        %1296 = vmatprep.subr.mxu0 0.0
        %1297 = vmatpush2.msra.mxu0 0.0
        %1298 = vmatprep.subr.mxu0 0.0
        %1299 = vmatpush2.msra.mxu0 0.0
        %1300 = vmatprep.subr.mxu0 0.0
        %1301 = vmatpush2.msra.mxu0 0.0
        %1302 = vmatprep.subr.mxu0 0.0
        %1303 = vmatpush2.msra.mxu0 0.0
        %1304 = vmatprep.subr.mxu0 0.0
        %1305 = vmatpush2.msra.mxu0 0.0
        %1306 = vmatprep.subr.mxu0 0.0
        %1307 = vmatpush2.msra.mxu0 0.0
        %1308 = vmatprep.subr.mxu0 0.0
        %1309 = vmatpush2.msra.mxu0 0.0
        %1310 = vmatprep.subr.mxu0 0.0
        %1311 = vmatpush2.msra.mxu0 0.0
        %1312 = vmatprep.subr.mxu0 0.0
        %1313 = vmatpush2.msra.mxu0 0.0
        %1314 = vmatprep.subr.mxu0 0.0
        %1315 = vmatpush2.msra.mxu0 0.0
        %1316 = vmatprep.subr.mxu0 0.0
        %1317 = vmatpush2.msra.mxu0 0.0
        %1318 = vmatprep.subr.mxu0 0.0
        %1319 = vmatpush2.msra.mxu0 0.0
        %1320 = vmatprep.subr.mxu0 0.0
        %1321 = vmatpush2.msra.mxu0 0.0
        %1322 = vmatprep.subr.mxu0 0.0
        %1323 = vmatpush2.msra.mxu0 0.0
        %1324 = vmatprep.subr.mxu0 0.0
        %1325 = vmatpush2.msra.mxu0 0.0
        %1326 = vmatprep.mubr.f32.mxu0 0.0
        %1327 = vmatmul.mubr.f32.gmra.mxu0 %v1225
        %v1328 = vpop.f32.mrf.mxu0
        %v1329 = vadd.f32 0.0, %v1328
        %v1330 = vpop.f32.mrf.mxu0
        %1331 = vmatprep.mubr.f32.mxu0 0.0
        %1332 = vmatmul.mubr.f32.gmra.mxu0 %v1227
        %v1333 = vpop.f32.mrf.mxu0
        %v1334 = vadd.f32 0.0, %v1333
        %v1335 = vpop.f32.mrf.mxu0
        %1336 = vmatprep.mubr.f32.mxu0 0.0
        %1337 = vmatmul.mubr.f32.gmra.mxu0 %v1229
        %v1338 = vpop.f32.mrf.mxu0
        %v1339 = vadd.f32 0.0, %v1338
        %v1340 = vpop.f32.mrf.mxu0
        %1341 = vdwg.mxu0
        %1342 = vmatprep.subr.mxu0 0.0
        %1343 = vmatpush1.msra.mxu0 %v1245
        %1344 = vmatprep.subr.mxu0 0.0
        %1345 = vmatpush1.msra.mxu0 %v1244
        %1346 = vmatprep.subr.mxu0 0.0
        %1347 = vmatpush1.msra.mxu0 %v1243
        %1348 = vmatprep.subr.mxu0 0.0
        %1349 = vmatpush1.msra.mxu0 %v1242
        %1350 = vmatprep.subr.mxu0 0.0
        %1351 = vmatpush1.msra.mxu0 %v1241
        %1352 = vmatprep.subr.mxu0 0.0
        %1353 = vmatpush1.msra.mxu0 %v1240
        %1354 = vmatprep.subr.mxu0 0.0
        %1355 = vmatpush1.msra.mxu0 %v1239
        %1356 = vmatprep.subr.mxu0 0.0
        %1357 = vmatpush1.msra.mxu0 %v1238
        %1358 = vmatprep.subr.mxu0 0.0
        %1359 = vmatpush1.msra.mxu0 %v1237
        %1360 = vmatprep.subr.mxu0 0.0
        %1361 = vmatpush1.msra.mxu0 %v1236
        %1362 = vmatprep.subr.mxu0 0.0
        %1363 = vmatpush1.msra.mxu0 %v1235
        %1364 = vmatprep.subr.mxu0 0.0
        %1365 = vmatpush1.msra.mxu0 %v1234
        %1366 = vmatprep.subr.mxu0 0.0
        %1367 = vmatpush1.msra.mxu0 %v1233
        %1368 = vmatprep.subr.mxu0 0.0
        %1369 = vmatpush1.msra.mxu0 %v1232
        %1370 = vmatprep.subr.mxu0 0.0
        %1371 = vmatpush1.msra.mxu0 %v1231
        %1372 = vmatprep.subr.mxu0 0.0
        %1373 = vmatpush1.msra.mxu0 %v1230
        %1374 = vmatprep.subr.mxu0 0.0
        %1375 = vmatpush2.msra.mxu0 0.0
        %1376 = vmatprep.subr.mxu0 0.0
        %1377 = vmatpush2.msra.mxu0 0.0
        %1378 = vmatprep.subr.mxu0 0.0
        %1379 = vmatpush2.msra.mxu0 0.0
        %1380 = vmatprep.subr.mxu0 0.0
        %1381 = vmatpush2.msra.mxu0 0.0
        %1382 = vmatprep.subr.mxu0 0.0
        %1383 = vmatpush2.msra.mxu0 0.0
        %1384 = vmatprep.subr.mxu0 0.0
        %1385 = vmatpush2.msra.mxu0 0.0
        %1386 = vmatprep.subr.mxu0 0.0
        %1387 = vmatpush2.msra.mxu0 0.0
        %1388 = vmatprep.subr.mxu0 0.0
        %1389 = vmatpush2.msra.mxu0 0.0
        %1390 = vmatprep.subr.mxu0 0.0
        %1391 = vmatpush2.msra.mxu0 0.0
        %1392 = vmatprep.subr.mxu0 0.0
        %1393 = vmatpush2.msra.mxu0 0.0
        %1394 = vmatprep.subr.mxu0 0.0
        %1395 = vmatpush2.msra.mxu0 0.0
        %1396 = vmatprep.subr.mxu0 0.0
        %1397 = vmatpush2.msra.mxu0 0.0
        %1398 = vmatprep.subr.mxu0 0.0
        %1399 = vmatpush2.msra.mxu0 0.0
        %1400 = vmatprep.subr.mxu0 0.0
        %1401 = vmatpush2.msra.mxu0 0.0
        %1402 = vmatprep.subr.mxu0 0.0
        %1403 = vmatpush2.msra.mxu0 0.0
        %1404 = vmatprep.subr.mxu0 0.0
        %1405 = vmatpush2.msra.mxu0 0.0
        %1406 = vmatprep.mubr.f32.mxu0 0.0
        %1407 = vmatmul.mubr.f32.gmra.mxu0 %v1186
        %v1408 = vpop.f32.mrf.mxu0
        %v1409 = vadd.f32 %v1329, %v1408
        %v1410 = vpop.f32.mrf.mxu0
        %1411 = vmatprep.mubr.f32.mxu0 0.0
        %1412 = vmatmul.mubr.f32.gmra.mxu0 %v1188
        %v1413 = vpop.f32.mrf.mxu0
        %v1414 = vadd.f32 %v1334, %v1413
        %v1415 = vpop.f32.mrf.mxu0
        %1416 = vmatprep.mubr.f32.mxu0 0.0
        %1417 = vmatmul.mubr.f32.gmra.mxu0 %v1190
        %v1418 = vpop.f32.mrf.mxu0
        %v1419 = vadd.f32 %v1339, %v1418
        %v1420 = vpop.f32.mrf.mxu0
        %1421 = vdwg.mxu0
        %v1422 = vlaneseq
        %v1423 = vshrl.u32 %v1422, 7
        %v1424 = vsub.s32 3, %v1423
        %v1425 = vrot.slane %v333, %v1424
        %v1426 = vadd.f32 %v1409, %v1425
        %v1427 = vadd.f32 %v1414, %v1425
        %v1428 = vadd.f32 %v1419, %v1425
        %v1429 = vmax.f32 %v1426, 0.0
        %v1430 = vmax.f32 %v1427, 0.0
        %v1431 = vmax.f32 %v1428, 0.0
        %1433 = vset.pattern.permute.xlu0 0
        %1434 = vperm.xlu0 %1433, %v333
        %v1435 = vpop.permute.xlu0 %1434
        %v1436 = vrot.slane %v333, 4
        %v1437 = vrot.slane %v1435, 5
        %vm1439 = vcmask 261120
        %v1440 = vsel %vm1439, %v1436, 0
        %v1443 = vsel %vm1439, %v1429, 0
        %v1446 = vsel %vm1439, %v1430, 0
        %v1449 = vsel %vm1439, %v1431, 0
        %1451 = vmatprep.subr.mxu0 0.0
        %1452 = vmatpush1.xpose.msra.mxu0 0.0
        %1453 = vmatprep.subr.mxu0 0.0
        %1454 = vmatpush1.xpose.msra.mxu0 0.0
        %1455 = vmatprep.subr.mxu0 0.0
        %1456 = vmatpush1.xpose.msra.mxu0 0.0
        %1457 = vmatprep.subr.mxu0 0.0
        %1458 = vmatpush1.xpose.msra.mxu0 0.0
        %1459 = vmatprep.subr.mxu0 0.0
        %1460 = vmatpush1.xpose.msra.mxu0 0.0
        %1461 = vmatprep.subr.mxu0 0.0
        %1462 = vmatpush1.xpose.msra.mxu0 0.0
        %1463 = vmatprep.subr.mxu0 0.0
        %1464 = vmatpush1.xpose.msra.mxu0 0.0
        %1465 = vmatprep.subr.mxu0 0.0
        %1466 = vmatpush1.xpose.msra.mxu0 0.0
        %1467 = vmatprep.subr.mxu0 0.0
        %1468 = vmatpush1.xpose.msra.mxu0 0.0
        %1469 = vmatprep.subr.mxu0 0.0
        %1470 = vmatpush1.xpose.msra.mxu0 0.0
        %1471 = vmatprep.subr.mxu0 0.0
        %1472 = vmatpush1.xpose.msra.mxu0 0.0
        %1473 = vmatprep.subr.mxu0 0.0
        %1474 = vmatpush1.xpose.msra.mxu0 0.0
        %1475 = vmatprep.subr.mxu0 0.0
        %1476 = vmatpush1.xpose.msra.mxu0 0.0
        %1477 = vmatprep.subr.mxu0 0.0
        %1478 = vmatpush1.xpose.msra.mxu0 %v1449
        %1479 = vmatprep.subr.mxu0 0.0
        %1480 = vmatpush1.xpose.msra.mxu0 %v1446
        %1481 = vmatprep.subr.mxu0 0.0
        %1482 = vmatpush1.xpose.msra.mxu0 %v1443
        %1483 = vmatprep.subr.mxu0 0.0
        %1484 = vmatpush2.xpose.msra.mxu0 0.0
        %1485 = vmatprep.subr.mxu0 0.0
        %1486 = vmatpush2.xpose.msra.mxu0 0.0
        %1487 = vmatprep.subr.mxu0 0.0
        %1488 = vmatpush2.xpose.msra.mxu0 0.0
        %1489 = vmatprep.subr.mxu0 0.0
        %1490 = vmatpush2.xpose.msra.mxu0 0.0
        %1491 = vmatprep.subr.mxu0 0.0
        %1492 = vmatpush2.xpose.msra.mxu0 0.0
        %1493 = vmatprep.subr.mxu0 0.0
        %1494 = vmatpush2.xpose.msra.mxu0 0.0
        %1495 = vmatprep.subr.mxu0 0.0
        %1496 = vmatpush2.xpose.msra.mxu0 0.0
        %1497 = vmatprep.subr.mxu0 0.0
        %1498 = vmatpush2.xpose.msra.mxu0 0.0
        %1499 = vmatprep.subr.mxu0 0.0
        %1500 = vmatpush2.xpose.msra.mxu0 0.0
        %1501 = vmatprep.subr.mxu0 0.0
        %1502 = vmatpush2.xpose.msra.mxu0 0.0
        %1503 = vmatprep.subr.mxu0 0.0
        %1504 = vmatpush2.xpose.msra.mxu0 0.0
        %1505 = vmatprep.subr.mxu0 0.0
        %1506 = vmatpush2.xpose.msra.mxu0 0.0
        %1507 = vmatprep.subr.mxu0 0.0
        %1508 = vmatpush2.xpose.msra.mxu0 0.0
        %1509 = vmatprep.subr.mxu0 0.0
        %1510 = vmatpush2.xpose.msra.mxu0 0.0
        %1511 = vmatprep.subr.mxu0 0.0
        %1512 = vmatpush2.xpose.msra.mxu0 0.0
        %1513 = vmatprep.subr.mxu0 0.0
        %1514 = vmatpush2.xpose.msra.mxu0 0.0
        %1515 = vmatprep.mubr.f32.mxu0 0.0
        %1516 = vmatmul.mubr.f32.gmra.mxu0 %v1440
        %v1517 = vpop.f32.mrf.mxu0
        %v1518 = vadd.f32 %v1437, %v1517
        %v1519 = vpop.f32.mrf.mxu0
        %1520 = vdwg.mxu0
        %vm1521 = vcmask 188416
        %1522 = vst.msk [vmem:[%s318] sm:$0x1] %vm1521, %v1518
        %s1523 = sand.u32 %s208, 1
        %s1524 = scalar_lea.sflag [#allocation3], %s1523
        %s1525 = sand.u32 %s208, 1
        %s1526 = scalar_lea.vmem [#allocation2], %s1525
        // Predicated region
        $region53: #{tpu_custom_call.1} parent=51 // pred_check
          %p1527 = pneg %p218
        $region54: #{tpu_custom_call.1} parent=51 // pred_check_branch
          %1529 = sbr.rel (%p1527) target = $region56
        $region55: #{tpu_custom_call.1} parent=51 // pred_region
          %s1531 = ssub.s32 16, 16
          %1532 = vsyncadd %s1524, %s1531
          %s1533 = smul.addr %s22, 16
          %s1534 = scalar_lea.hbm %s8, %s1533
          %s1536 = sshll.u32 %s1526, 4
          %s1537 = int_to_ptr.vmem [resolvable:$true] %s1536
          %1539 = dma.vmem_to_hbm [thread:$0]  %s1537, 16, %s1534, %s1524
        $region56: #{tpu_custom_call.1} parent=51 // pred_fallthru
          _
      $region52: #{tpu_custom_call.1} parent=5 // pred_fallthru
        _
      %p1540 = scmp.le.s32.totalorder 2, %s17
      // Predicated region
      $region57: #{tpu_custom_call.1} parent=5 // pred_check
        %p1541 = pneg %p1540
      $region58: #{tpu_custom_call.1} parent=5 // pred_check_branch
        %1543 = sbr.rel (%p1541) target = $region60
      $region59: #{tpu_custom_call.1} parent=5 // pred_region
        %s1544 = ssub.s32 %s17, 2
        // Predicated region
        $region61: #{tpu_custom_call.1} parent=59 // pred_check
          %p1545 = pneg %p224
        $region62: #{tpu_custom_call.1} parent=59 // pred_check_branch
          %1547 = sbr.rel (%p1545) target = $region64
        $region63: #{tpu_custom_call.1} parent=59 // pred_region
          %s1548 = sand.u32 %s209, 1
          %s1549 = scalar_lea.sflag [#allocation3], %s1548
          %s1550 = sand.u32 %s209, 1
          %s1551 = scalar_lea.vmem [#allocation2], %s1550
          %1552 = dma.done %s1549, 16
        $region64: #{tpu_custom_call.1} parent=59 // pred_fallthru
          _
      $region60: #{tpu_custom_call.1} parent=5 // pred_fallthru
        _
    $region6: #{tpu_custom_call.1} parent=1 // loop_footer
      %s21 = sadd.s32 1, %s17
    $region7: #{tpu_custom_call.1} parent=1 // loop_footer_branch
      %16 = sbr.rel target = $region3
    $region8: #{tpu_custom_call.1} parent=1 // loop_exit
      _
    %1553 = vsyncpa [#allocation3], 1
    %s1554 = scalar_lea.sflag [#allocation3], 1
    %1555 = vsyncpa %s1554, 1

</llo_original>
